<compile_context>
chip_gen: v7x
topology: tpu7x:2x2x1
jax: 0.10.0
libtpu: 0.0.40
codegen_flags: <defaults>
</compile_context>

<pallas_src>
import functools

import numpy as np
import jax
import jax.numpy as jnp
from jax.experimental import pallas as pl
from jax.experimental.pallas import tpu as pltpu


def _pca_kernel(cur_ref, prev_ref, wq_ref, bq_ref, wkv_ref, bkv_ref,
                wp_ref, bp_ref, head_bias_ref, out_ref, *, num_heads):
    """One grid step = one batch element of PatchCrossAttention.

    cur_ref      : (1, N_cur,  C)        bf16
    prev_ref     : (1, N_prev, C)        bf16
    wq_ref       : (C, C)                bf16  (softmax scale folded in)
    bq_ref       : (1, C)                f32   (softmax scale folded in)
    wkv_ref      : (C, 2C)               bf16
    bkv_ref      : (1, 2C)               f32
    wp_ref       : (C, C)                bf16
    bp_ref       : (1, C)                f32
    head_bias_ref: (H*N_cur, H*N_prev)   f32   (0 on-head / -1e30 cross-head)
    out_ref      : (1, N_cur, C)         f32
    """
    _, n_cur, c = cur_ref.shape
    n_prev = prev_ref.shape[1]
    hd = c // num_heads
    f32, bf16 = jnp.float32, jnp.bfloat16

    cur = cur_ref[0]     # (N_cur,  C) bf16
    prev = prev_ref[0]   # (N_prev, C) bf16

    # --- Full-width, lane-dense projections (one MXU matmul each, f32 accum).
    q = jnp.dot(cur, wq_ref[...], preferred_element_type=f32) + bq_ref[...]
    kv = jnp.dot(prev, wkv_ref[...], preferred_element_type=f32) + bkv_ref[...]
    k = kv[:, :c]        # (N_prev, C); head h lives in lanes [h*hd, (h+1)*hd)
    v = kv[:, c:]        # (N_prev, C)

    # --- Pack heads from lanes into sublanes: (N, C) -> (H*N, hd).
    def pack_heads(x):
        return jnp.concatenate(
            [x[:, h * hd:(h + 1) * hd] for h in range(num_heads)], axis=0)

    qp = pack_heads(q).astype(bf16)     # (H*N_cur,  hd)
    kp = pack_heads(k).astype(bf16)     # (H*N_prev, hd)
    vp = pack_heads(v).astype(bf16)     # (H*N_prev, hd)

    # --- Attention core: two dense matmuls across all heads at once.
    # Cross-head score blocks are pushed to -1e30; after softmax those
    # probabilities are exactly zero, so p @ vp reproduces per-head attention.
    s = jax.lax.dot_general(qp, kp, (((1,), (1,)), ((), ())),
                            preferred_element_type=f32)      # (H*Nc, H*Np)
    s = s + head_bias_ref[...]
    s = s - jnp.max(s, axis=-1, keepdims=True)
    p = jnp.exp(s)
    p = p / jnp.sum(p, axis=-1, keepdims=True)               # exact normalization

    o = jnp.dot(p.astype(bf16), vp, preferred_element_type=f32)   # (H*Nc, hd)

    # --- Unpack heads back into lanes; the head-merge (concat) is then folded
    # into a single full-width (N_cur, C) @ (C, C) output projection.
    o = jnp.concatenate(
        [o[h * n_cur:(h + 1) * n_cur, :] for h in range(num_heads)], axis=1)
    out = jnp.dot(o.astype(bf16), wp_ref[...], preferred_element_type=f32)
    out = out + bp_ref[...]
    out_ref[0] = out.astype(out_ref.dtype)


def patch_cross_attention(cur_patches, prev_patches, params, *, num_heads,
                          qk_scale=None, compute_dtype=jnp.bfloat16):
    """Pallas-backed forward. params holds (in, out)-layout weights."""
    B, n_cur, c = cur_patches.shape
    _, n_prev, _ = prev_patches.shape
    assert c % num_heads == 0, "num_heads must divide dim"
    hd = c // num_heads
    scale = qk_scale if qk_scale is not None else hd ** (-0.5)

    # ---- Host/XLA-side parameter prep (free relative to the kernel) ----
    # Lane-dense weights (C,C)/(C,2C) in bf16, lane-dense f32 bias rows,
    # softmax scale folded into the q projection.
    wq = (params["wq"] * scale).astype(compute_dtype)               # (C, C)
    bq = (params["bq"] * scale).reshape(1, c).astype(jnp.float32)   # (1, C)
    wkv = params["wkv"].astype(compute_dtype)                       # (C, 2C)
    bkv = params["bkv"].reshape(1, 2 * c).astype(jnp.float32)       # (1, 2C)
    wp = params["wp"].astype(compute_dtype)                         # (C, C)
    bp = params["bp"].reshape(1, c).astype(jnp.float32)             # (1, C)

    # Activations cast to bf16 on the host: halves HBM->VMEM input DMA bytes.
    cur = cur_patches.astype(compute_dtype)
    prev = prev_patches.astype(compute_dtype)

    # Constant additive block-diagonal head bias for the packed score matmul
    # (built host-side so the kernel needs no iota / integer division).
    rh = np.arange(num_heads * n_cur)[:, None] // n_cur
    ch = np.arange(num_heads * n_prev)[None, :] // n_prev
    head_bias = jnp.asarray(np.where(rh == ch, 0.0, -1e30).astype(np.float32))

    kernel = functools.partial(_pca_kernel, num_heads=num_heads)

    def fixed(shape):  # grid-invariant block: DMA'd once, stays resident
        return pl.BlockSpec(shape, lambda b: (0,) * len(shape))

    hn_c, hn_p = num_heads * n_cur, num_heads * n_prev
    flops = int(2 * B * (n_cur * c * c                # q projection
                         + n_prev * c * 2 * c         # kv projection
                         + 2 * hn_c * hn_p * hd       # packed qk^T and p@v
                         + n_cur * c * c))            # output projection
    transcendentals = int(B * hn_c * hn_p)            # exp
    bytes_accessed = int(
        2 * (cur.size + prev.size + wq.size + wkv.size + wp.size)   # bf16
        + 4 * (bq.size + bkv.size + bp.size + head_bias.size)       # f32
        + 4 * B * n_cur * c)                                        # f32 output

    return pl.pallas_call(
        kernel,
        out_shape=jax.ShapeDtypeStruct((B, n_cur, c), cur_patches.dtype),
        grid_spec=pltpu.PrefetchScalarGridSpec(
            num_scalar_prefetch=0,
            grid=(B,),
            in_specs=[
                pl.BlockSpec((1, n_cur, c), lambda b: (b, 0, 0)),
                pl.BlockSpec((1, n_prev, c), lambda b: (b, 0, 0)),
                fixed((c, c)),          # wq  (scale folded)
                fixed((1, c)),          # bq
                fixed((c, 2 * c)),      # wkv
                fixed((1, 2 * c)),      # bkv
                fixed((c, c)),          # wp
                fixed((1, c)),          # bp
                fixed((hn_c, hn_p)),    # head bias
            ],
            out_specs=pl.BlockSpec((1, n_cur, c), lambda b: (b, 0, 0)),
        ),
        compiler_params=pltpu.CompilerParams(
            dimension_semantics=("parallel",)),
        cost_estimate=pl.CostEstimate(flops=flops,
                                      transcendentals=transcendentals,
                                      bytes_accessed=bytes_accessed),
    )(cur, prev, wq, bq, wkv, bkv, wp, bp, head_bias)


def patch_cross_attention_ref(cur_patches, prev_patches, params, *, num_heads):
    """Pure-JAX f32 reference mirroring the PyTorch forward (eval mode)."""
    B, n_cur, c = cur_patches.shape
    _, n_prev, _ = prev_patches.shape
    hd = c // num_heads
    scale = hd ** (-0.5)

    q = cur_patches @ params["wq"] + params["bq"]                 # (B, Nc, C)
    kv = prev_patches @ params["wkv"] + params["bkv"]             # (B, Np, 2C)
    k, v = kv[..., :c], kv[..., c:]

    q = q.reshape(B, n_cur, num_heads, hd).transpose(0, 2, 1, 3) * scale
    k = k.reshape(B, n_prev, num_heads, hd).transpose(0, 2, 1, 3)
    v = v.reshape(B, n_prev, num_heads, hd).transpose(0, 2, 1, 3)

    attn = jnp.einsum("bhqd,bhkd->bhqk", q, k)
    attn = jax.nn.softmax(attn, axis=-1)
    x = jnp.einsum("bhqk,bhkd->bhqd", attn, v)
    x = x.transpose(0, 2, 1, 3).reshape(B, n_cur, c)
    return x @ params["wp"] + params["bp"]


def init_params(key, dim):
    """Deterministic synthetic parameters, stored (in, out) so kernels do x @ W + b."""
    ks = jax.random.split(key, 6)
    std = 0.02
    return {
        "wq": jax.random.normal(ks[0], (dim, dim), jnp.float32) * std,
        "bq": jax.random.normal(ks[1], (dim,), jnp.float32) * std,
        "wkv": jax.random.normal(ks[2], (dim, 2 * dim), jnp.float32) * std,
        "bkv": jax.random.normal(ks[3], (2 * dim,), jnp.float32) * std,
        "wp": jax.random.normal(ks[4], (dim, dim), jnp.float32) * std,
        "bp": jax.random.normal(ks[5], (dim,), jnp.float32) * std,
    }


if __name__ == "__main__":
    # Module defaults: dim=256, num_heads=8 (dim=256 keeps all matmul outputs
    # lane-dense). Small batch / patch counts.
    B, N_CUR, N_PREV, DIM, NUM_HEADS = 2, 8, 8, 256, 8

    key = jax.random.PRNGKey(0)
    k_cur, k_prev, k_par = jax.random.split(key, 3)

    cur_patches = jax.random.normal(k_cur, (B, N_CUR, DIM), jnp.float32)
    prev_patches = jax.random.normal(k_prev, (B, N_PREV, DIM), jnp.float32)
    params = init_params(k_par, DIM)

    out = patch_cross_attention(cur_patches, prev_patches, params,
                                num_heads=NUM_HEADS)
    out = jax.block_until_ready(out)

    ref = patch_cross_attention_ref(cur_patches, prev_patches, params,
                                    num_heads=NUM_HEADS)
    assert out.shape == (B, N_CUR, DIM)
    # Tolerance accounts for bf16 activations/weights on the MXU (f32 accum).
    assert jnp.allclose(out, ref, atol=2e-2, rtol=2e-2), "mismatch vs reference"

    print("KERNEL_OK")
</pallas_src>

<mosaic_0001>
module attributes {stable_mosaic.version = 11 : i64} {
  func.func @_pca_kernel(%arg0: i32, %arg1: memref<1x8x256xbf16, #tpu.memory_space<vmem>>, %arg2: memref<1x8x256xbf16, #tpu.memory_space<vmem>>, %arg3: memref<256x256xbf16, #tpu.memory_space<vmem>>, %arg4: memref<1x256xf32, #tpu.memory_space<vmem>>, %arg5: memref<256x512xbf16, #tpu.memory_space<vmem>>, %arg6: memref<1x512xf32, #tpu.memory_space<vmem>>, %arg7: memref<256x256xbf16, #tpu.memory_space<vmem>>, %arg8: memref<1x256xf32, #tpu.memory_space<vmem>>, %arg9: memref<64x64xf32, #tpu.memory_space<vmem>>, %arg10: memref<1x8x256xf32, #tpu.memory_space<vmem>>) attributes {dimension_semantics = [#tpu.dimension_semantics<parallel>], iteration_bounds = array<i64: 2>, scalar_prefetch = 0 : i64, scratch_operands = 0 : i64, tpu.core_type = #tpu.core_type<tc>, window_params = [{transform_indices = @transform_0, window_bounds = array<i64: 1, 8, 256>}, {transform_indices = @transform_1, window_bounds = array<i64: 1, 8, 256>}, {pipeline_mode = #tpu.pipeline_mode<synchronous>, transform_indices = @transform_2, window_bounds = array<i64: 256, 256>}, {pipeline_mode = #tpu.pipeline_mode<synchronous>, transform_indices = @transform_3, window_bounds = array<i64: 1, 256>}, {pipeline_mode = #tpu.pipeline_mode<synchronous>, transform_indices = @transform_4, window_bounds = array<i64: 256, 512>}, {pipeline_mode = #tpu.pipeline_mode<synchronous>, transform_indices = @transform_5, window_bounds = array<i64: 1, 512>}, {pipeline_mode = #tpu.pipeline_mode<synchronous>, transform_indices = @transform_6, window_bounds = array<i64: 256, 256>}, {pipeline_mode = #tpu.pipeline_mode<synchronous>, transform_indices = @transform_7, window_bounds = array<i64: 1, 256>}, {pipeline_mode = #tpu.pipeline_mode<synchronous>, transform_indices = @transform_8, window_bounds = array<i64: 64, 64>}, {transform_indices = @transform_9, window_bounds = array<i64: 1, 8, 256>}]} {
    %c0 = arith.constant 0 : index
    %c0_0 = arith.constant 0 : index
    %c0_1 = arith.constant 0 : index
    %0 = vector.load %arg1[%c0, %c0_0, %c0_1] : memref<1x8x256xbf16, #tpu.memory_space<vmem>>, vector<1x8x256xbf16>
    %1 = vector.shape_cast %0 : vector<1x8x256xbf16> to vector<8x256xbf16>
    %c0_2 = arith.constant 0 : index
    %c0_3 = arith.constant 0 : index
    %c0_4 = arith.constant 0 : index
    %2 = vector.load %arg2[%c0_2, %c0_3, %c0_4] : memref<1x8x256xbf16, #tpu.memory_space<vmem>>, vector<1x8x256xbf16>
    %3 = vector.shape_cast %2 : vector<1x8x256xbf16> to vector<8x256xbf16>
    %c0_5 = arith.constant 0 : index
    %c0_6 = arith.constant 0 : index
    %4 = vector.load %arg3[%c0_5, %c0_6] : memref<256x256xbf16, #tpu.memory_space<vmem>>, vector<256x256xbf16>
    %cst = arith.constant dense<0.000000e+00> : vector<8x256xf32>
    %5 = tpu.matmul %1, %4, %cst {dimension_numbers = #tpu.dot_dimension_numbers<[1], [0], [0], [1], [0, 0, 1, 1], [], []>} : vector<8x256xbf16>, vector<256x256xbf16>, vector<8x256xf32> -> vector<8x256xf32>
    %c0_7 = arith.constant 0 : index
    %c0_8 = arith.constant 0 : index
    %6 = vector.load %arg4[%c0_7, %c0_8] : memref<1x256xf32, #tpu.memory_space<vmem>>, vector<1x256xf32>
    %7 = vector.broadcast %6 : vector<1x256xf32> to vector<8x256xf32>
    %8 = arith.addf %5, %7 : vector<8x256xf32>
    %c0_9 = arith.constant 0 : index
    %c0_10 = arith.constant 0 : index
    %9 = vector.load %arg5[%c0_9, %c0_10] : memref<256x512xbf16, #tpu.memory_space<vmem>>, vector<256x512xbf16>
    %cst_11 = arith.constant dense<0.000000e+00> : vector<8x512xf32>
    %10 = tpu.matmul %3, %9, %cst_11 {dimension_numbers = #tpu.dot_dimension_numbers<[1], [0], [0], [1], [0, 0, 1, 1], [], []>} : vector<8x256xbf16>, vector<256x512xbf16>, vector<8x512xf32> -> vector<8x512xf32>
    %c0_12 = arith.constant 0 : index
    %c0_13 = arith.constant 0 : index
    %11 = vector.load %arg6[%c0_12, %c0_13] : memref<1x512xf32, #tpu.memory_space<vmem>>, vector<1x512xf32>
    %12 = vector.broadcast %11 : vector<1x512xf32> to vector<8x512xf32>
    %13 = arith.addf %10, %12 : vector<8x512xf32>
    %14 = vector.extract_strided_slice %13 {offsets = [0, 0], sizes = [8, 256], strides = [1, 1]} : vector<8x512xf32> to vector<8x256xf32>
    %15 = vector.extract_strided_slice %13 {offsets = [0, 256], sizes = [8, 256], strides = [1, 1]} : vector<8x512xf32> to vector<8x256xf32>
    %16 = vector.extract_strided_slice %8 {offsets = [0, 0], sizes = [8, 32], strides = [1, 1]} : vector<8x256xf32> to vector<8x32xf32>
    %17 = vector.extract_strided_slice %8 {offsets = [0, 32], sizes = [8, 32], strides = [1, 1]} : vector<8x256xf32> to vector<8x32xf32>
    %18 = vector.extract_strided_slice %8 {offsets = [0, 64], sizes = [8, 32], strides = [1, 1]} : vector<8x256xf32> to vector<8x32xf32>
    %19 = vector.extract_strided_slice %8 {offsets = [0, 96], sizes = [8, 32], strides = [1, 1]} : vector<8x256xf32> to vector<8x32xf32>
    %20 = vector.extract_strided_slice %8 {offsets = [0, 128], sizes = [8, 32], strides = [1, 1]} : vector<8x256xf32> to vector<8x32xf32>
    %21 = vector.extract_strided_slice %8 {offsets = [0, 160], sizes = [8, 32], strides = [1, 1]} : vector<8x256xf32> to vector<8x32xf32>
    %22 = vector.extract_strided_slice %8 {offsets = [0, 192], sizes = [8, 32], strides = [1, 1]} : vector<8x256xf32> to vector<8x32xf32>
    %23 = vector.extract_strided_slice %8 {offsets = [0, 224], sizes = [8, 32], strides = [1, 1]} : vector<8x256xf32> to vector<8x32xf32>
    %24 = tpu.concatenate %16, %17, %18, %19, %20, %21, %22, %23 in 0 : vector<8x32xf32>, vector<8x32xf32>, vector<8x32xf32>, vector<8x32xf32>, vector<8x32xf32>, vector<8x32xf32>, vector<8x32xf32>, vector<8x32xf32> -> vector<64x32xf32>
    %25 = arith.truncf %24 : vector<64x32xf32> to vector<64x32xbf16>
    %26 = vector.extract_strided_slice %14 {offsets = [0, 0], sizes = [8, 32], strides = [1, 1]} : vector<8x256xf32> to vector<8x32xf32>
    %27 = vector.extract_strided_slice %14 {offsets = [0, 32], sizes = [8, 32], strides = [1, 1]} : vector<8x256xf32> to vector<8x32xf32>
    %28 = vector.extract_strided_slice %14 {offsets = [0, 64], sizes = [8, 32], strides = [1, 1]} : vector<8x256xf32> to vector<8x32xf32>
    %29 = vector.extract_strided_slice %14 {offsets = [0, 96], sizes = [8, 32], strides = [1, 1]} : vector<8x256xf32> to vector<8x32xf32>
    %30 = vector.extract_strided_slice %14 {offsets = [0, 128], sizes = [8, 32], strides = [1, 1]} : vector<8x256xf32> to vector<8x32xf32>
    %31 = vector.extract_strided_slice %14 {offsets = [0, 160], sizes = [8, 32], strides = [1, 1]} : vector<8x256xf32> to vector<8x32xf32>
    %32 = vector.extract_strided_slice %14 {offsets = [0, 192], sizes = [8, 32], strides = [1, 1]} : vector<8x256xf32> to vector<8x32xf32>
    %33 = vector.extract_strided_slice %14 {offsets = [0, 224], sizes = [8, 32], strides = [1, 1]} : vector<8x256xf32> to vector<8x32xf32>
    %34 = tpu.concatenate %26, %27, %28, %29, %30, %31, %32, %33 in 0 : vector<8x32xf32>, vector<8x32xf32>, vector<8x32xf32>, vector<8x32xf32>, vector<8x32xf32>, vector<8x32xf32>, vector<8x32xf32>, vector<8x32xf32> -> vector<64x32xf32>
    %35 = arith.truncf %34 : vector<64x32xf32> to vector<64x32xbf16>
    %36 = vector.extract_strided_slice %15 {offsets = [0, 0], sizes = [8, 32], strides = [1, 1]} : vector<8x256xf32> to vector<8x32xf32>
    %37 = vector.extract_strided_slice %15 {offsets = [0, 32], sizes = [8, 32], strides = [1, 1]} : vector<8x256xf32> to vector<8x32xf32>
    %38 = vector.extract_strided_slice %15 {offsets = [0, 64], sizes = [8, 32], strides = [1, 1]} : vector<8x256xf32> to vector<8x32xf32>
    %39 = vector.extract_strided_slice %15 {offsets = [0, 96], sizes = [8, 32], strides = [1, 1]} : vector<8x256xf32> to vector<8x32xf32>
    %40 = vector.extract_strided_slice %15 {offsets = [0, 128], sizes = [8, 32], strides = [1, 1]} : vector<8x256xf32> to vector<8x32xf32>
    %41 = vector.extract_strided_slice %15 {offsets = [0, 160], sizes = [8, 32], strides = [1, 1]} : vector<8x256xf32> to vector<8x32xf32>
    %42 = vector.extract_strided_slice %15 {offsets = [0, 192], sizes = [8, 32], strides = [1, 1]} : vector<8x256xf32> to vector<8x32xf32>
    %43 = vector.extract_strided_slice %15 {offsets = [0, 224], sizes = [8, 32], strides = [1, 1]} : vector<8x256xf32> to vector<8x32xf32>
    %44 = tpu.concatenate %36, %37, %38, %39, %40, %41, %42, %43 in 0 : vector<8x32xf32>, vector<8x32xf32>, vector<8x32xf32>, vector<8x32xf32>, vector<8x32xf32>, vector<8x32xf32>, vector<8x32xf32>, vector<8x32xf32> -> vector<64x32xf32>
    %45 = arith.truncf %44 : vector<64x32xf32> to vector<64x32xbf16>
    %cst_14 = arith.constant dense<0.000000e+00> : vector<64x64xf32>
    %46 = tpu.matmul %25, %35, %cst_14 {dimension_numbers = #tpu.dot_dimension_numbers<[1], [1], [0], [0], [0, 0, 1, 0], [], []>} : vector<64x32xbf16>, vector<64x32xbf16>, vector<64x64xf32> -> vector<64x64xf32>
    %c0_15 = arith.constant 0 : index
    %c0_16 = arith.constant 0 : index
    %47 = vector.load %arg9[%c0_15, %c0_16] : memref<64x64xf32, #tpu.memory_space<vmem>>, vector<64x64xf32>
    %48 = arith.addf %46, %47 : vector<64x64xf32>
    %cst_17 = arith.constant dense<0xFF800000> : vector<64xf32>
    %49 = vector.multi_reduction <maximumf>, %48, %cst_17 [1] : vector<64x64xf32> to vector<64xf32>
    %50 = vector.shape_cast %49 : vector<64xf32> to vector<64x1xf32>
    %51 = vector.broadcast %50 : vector<64x1xf32> to vector<64x64xf32>
    %52 = arith.subf %48, %51 : vector<64x64xf32>
    %53 = math.exp %52 : vector<64x64xf32>
    %cst_18 = arith.constant dense<0.000000e+00> : vector<64xf32>
    %54 = vector.multi_reduction <add>, %53, %cst_18 [1] : vector<64x64xf32> to vector<64xf32>
    %55 = vector.shape_cast %54 : vector<64xf32> to vector<64x1xf32>
    %56 = vector.broadcast %55 : vector<64x1xf32> to vector<64x64xf32>
    %57 = arith.divf %53, %56 : vector<64x64xf32>
    %58 = arith.truncf %57 : vector<64x64xf32> to vector<64x64xbf16>
    %cst_19 = arith.constant dense<0.000000e+00> : vector<64x32xf32>
    %59 = tpu.matmul %58, %45, %cst_19 {dimension_numbers = #tpu.dot_dimension_numbers<[1], [0], [0], [1], [0, 0, 1, 1], [], []>} : vector<64x64xbf16>, vector<64x32xbf16>, vector<64x32xf32> -> vector<64x32xf32>
    %60 = vector.extract_strided_slice %59 {offsets = [0, 0], sizes = [8, 32], strides = [1, 1]} : vector<64x32xf32> to vector<8x32xf32>
    %61 = vector.extract_strided_slice %59 {offsets = [8, 0], sizes = [8, 32], strides = [1, 1]} : vector<64x32xf32> to vector<8x32xf32>
    %62 = vector.extract_strided_slice %59 {offsets = [16, 0], sizes = [8, 32], strides = [1, 1]} : vector<64x32xf32> to vector<8x32xf32>
    %63 = vector.extract_strided_slice %59 {offsets = [24, 0], sizes = [8, 32], strides = [1, 1]} : vector<64x32xf32> to vector<8x32xf32>
    %64 = vector.extract_strided_slice %59 {offsets = [32, 0], sizes = [8, 32], strides = [1, 1]} : vector<64x32xf32> to vector<8x32xf32>
    %65 = vector.extract_strided_slice %59 {offsets = [40, 0], sizes = [8, 32], strides = [1, 1]} : vector<64x32xf32> to vector<8x32xf32>
    %66 = vector.extract_strided_slice %59 {offsets = [48, 0], sizes = [8, 32], strides = [1, 1]} : vector<64x32xf32> to vector<8x32xf32>
    %67 = vector.extract_strided_slice %59 {offsets = [56, 0], sizes = [8, 32], strides = [1, 1]} : vector<64x32xf32> to vector<8x32xf32>
    %68 = tpu.concatenate %60, %61, %62, %63, %64, %65, %66, %67 in 1 : vector<8x32xf32>, vector<8x32xf32>, vector<8x32xf32>, vector<8x32xf32>, vector<8x32xf32>, vector<8x32xf32>, vector<8x32xf32>, vector<8x32xf32> -> vector<8x256xf32>
    %69 = arith.truncf %68 : vector<8x256xf32> to vector<8x256xbf16>
    %c0_20 = arith.constant 0 : index
    %c0_21 = arith.constant 0 : index
    %70 = vector.load %arg7[%c0_20, %c0_21] : memref<256x256xbf16, #tpu.memory_space<vmem>>, vector<256x256xbf16>
    %cst_22 = arith.constant dense<0.000000e+00> : vector<8x256xf32>
    %71 = tpu.matmul %69, %70, %cst_22 {dimension_numbers = #tpu.dot_dimension_numbers<[1], [0], [0], [1], [0, 0, 1, 1], [], []>} : vector<8x256xbf16>, vector<256x256xbf16>, vector<8x256xf32> -> vector<8x256xf32>
    %c0_23 = arith.constant 0 : index
    %c0_24 = arith.constant 0 : index
    %72 = vector.load %arg8[%c0_23, %c0_24] : memref<1x256xf32, #tpu.memory_space<vmem>>, vector<1x256xf32>
    %73 = vector.broadcast %72 : vector<1x256xf32> to vector<8x256xf32>
    %74 = arith.addf %71, %73 : vector<8x256xf32>
    %c0_25 = arith.constant 0 : index
    %c0_26 = arith.constant 0 : index
    %c0_27 = arith.constant 0 : index
    %75 = vector.load %arg10[%c0_25, %c0_26, %c0_27] : memref<1x8x256xf32, #tpu.memory_space<vmem>>, vector<1x8x256xf32>
    %76 = vector.shape_cast %75 : vector<1x8x256xf32> to vector<8x256xf32>
    %77 = vector.shape_cast %74 : vector<8x256xf32> to vector<1x8x256xf32>
    tpu.vector_store %arg10[%c0_25, %c0_26, %c0_27], %77 {strides = array<i32>} : memref<1x8x256xf32, #tpu.memory_space<vmem>>, vector<1x8x256xf32>,
    return
  }
  func.func @transform_0(%arg0: i32) -> (i32, i32, i32) {
    %c0_i32 = arith.constant 0 : i32
    %c0_i32_0 = arith.constant 0 : i32
    %c0_i32_1 = arith.constant 0 : i32
    return %arg0, %c0_i32, %c0_i32_0 : i32, i32, i32
  }
  func.func @transform_1(%arg0: i32) -> (i32, i32, i32) {
    %c0_i32 = arith.constant 0 : i32
    %c0_i32_0 = arith.constant 0 : i32
    %c0_i32_1 = arith.constant 0 : i32
    return %arg0, %c0_i32, %c0_i32_0 : i32, i32, i32
  }
  func.func @transform_2(%arg0: i32) -> (i32, i32) {
    %c0_i32 = arith.constant 0 : i32
    %c0_i32_0 = arith.constant 0 : i32
    %c0_i32_1 = arith.constant 0 : i32
    return %c0_i32, %c0_i32_0 : i32, i32
  }
  func.func @transform_3(%arg0: i32) -> (i32, i32) {
    %c0_i32 = arith.constant 0 : i32
    %c0_i32_0 = arith.constant 0 : i32
    %c0_i32_1 = arith.constant 0 : i32
    return %c0_i32, %c0_i32_0 : i32, i32
  }
  func.func @transform_4(%arg0: i32) -> (i32, i32) {
    %c0_i32 = arith.constant 0 : i32
    %c0_i32_0 = arith.constant 0 : i32
    %c0_i32_1 = arith.constant 0 : i32
    return %c0_i32, %c0_i32_0 : i32, i32
  }
  func.func @transform_5(%arg0: i32) -> (i32, i32) {
    %c0_i32 = arith.constant 0 : i32
    %c0_i32_0 = arith.constant 0 : i32
    %c0_i32_1 = arith.constant 0 : i32
    return %c0_i32, %c0_i32_0 : i32, i32
  }
  func.func @transform_6(%arg0: i32) -> (i32, i32) {
    %c0_i32 = arith.constant 0 : i32
    %c0_i32_0 = arith.constant 0 : i32
    %c0_i32_1 = arith.constant 0 : i32
    return %c0_i32, %c0_i32_0 : i32, i32
  }
  func.func @transform_7(%arg0: i32) -> (i32, i32) {
    %c0_i32 = arith.constant 0 : i32
    %c0_i32_0 = arith.constant 0 : i32
    %c0_i32_1 = arith.constant 0 : i32
    return %c0_i32, %c0_i32_0 : i32, i32
  }
  func.func @transform_8(%arg0: i32) -> (i32, i32) {
    %c0_i32 = arith.constant 0 : i32
    %c0_i32_0 = arith.constant 0 : i32
    %c0_i32_1 = arith.constant 0 : i32
    return %c0_i32, %c0_i32_0 : i32, i32
  }
  func.func @transform_9(%arg0: i32) -> (i32, i32, i32) {
    %c0_i32 = arith.constant 0 : i32
    %c0_i32_0 = arith.constant 0 : i32
    %c0_i32_1 = arith.constant 0 : i32
    return %arg0, %c0_i32, %c0_i32_0 : i32, i32, i32
  }
}

</mosaic_0001>

<llo_original>
// kernel: tpu_custom_call.1
$region0: #{tpu_custom_call.1}
  #allocation0 [shape = 'u32[]', space=smem, size = 0x4, offset = 0x4, fixed_abs, tag = 'smem constant byte address 0x4 - core index']
  #allocation1 [shape = 'u32[144,128]{1,0:T(1,128)}', space=vmem, size = 0x12000, scoped, tag = 'internal scratch']
  %s0 = inlined_call_operand.hbm [shape: bf16[2,8,256], index: 0, kind: input, shape index: {}]
  %s1 = inlined_call_operand.hbm [shape: bf16[2,8,256], index: 1, kind: input, shape index: {}]
  %s2 = inlined_call_operand.hbm [shape: bf16[256,256], index: 2, kind: input, shape index: {}]
  %s3 = inlined_call_operand.vmem [shape: f32[1,256], index: 3, kind: input, shape index: {}]
  %s4 = inlined_call_operand.hbm [shape: bf16[256,512], index: 4, kind: input, shape index: {}]
  %s5 = inlined_call_operand.vmem [shape: f32[1,512], index: 5, kind: input, shape index: {}]
  %s6 = inlined_call_operand.hbm [shape: bf16[256,256], index: 6, kind: input, shape index: {}]
  %s7 = inlined_call_operand.vmem [shape: f32[1,256], index: 7, kind: input, shape index: {}]
  %s8 = inlined_call_operand.hbm [shape: f32[64,64], index: 8, kind: input, shape index: {}]
  %s9 = inlined_call_operand.hbm [shape: f32[2,8,256], index: 9, kind: output, shape index: {}]
  %s10 = sld [smem:[#allocation0]]
  $region93: #{tpu_custom_call.1} parent=0
    _
  %s12 = ssub.s32 1, %s10
  %s13 = scalar_select 0, %s12, %s10
  $region1: #{tpu_custom_call.1} parent=0
    #allocation2 [shape = 'u8[8192]{0}', space=vmem, size = 0x2000, scoped, tag = 'input window, operand 0']
    #allocation3 [shape = 's32[2]{0}', space=sflag, size = 0x8, scoped, tag = 'scoped memory for tpu_custom_call.1']
    #allocation4 [shape = 's32[2]{0}', space=sflag, size = 0x8, scoped, tag = 'scoped memory for tpu_custom_call.1']
    #allocation5 [shape = 'u8[8192]{0}', space=vmem, size = 0x2000, scoped, tag = 'input window, operand 1']
    #allocation6 [shape = 's32[2]{0}', space=sflag, size = 0x8, scoped, tag = 'scoped memory for tpu_custom_call.1']
    #allocation7 [shape = 'u8[131072]{0}', space=vmem, size = 0x20000, scoped, tag = 'input window, operand 2, single buffered']
    #allocation8 [shape = 'u8[262144]{0}', space=vmem, size = 0x40000, scoped, tag = 'input window, operand 4, single buffered']
    #allocation9 [shape = 's32[1]{0}', space=sflag, size = 0x4, scoped, tag = 'scoped memory for tpu_custom_call.1']
    #allocation10 [shape = 'u8[131072]{0}', space=vmem, size = 0x20000, scoped, tag = 'input window, operand 6, single buffered']
    #allocation11 [shape = 'u8[32768]{0}', space=vmem, size = 0x8000, scoped, tag = 'input window, operand 8, single buffered']
    #allocation12 [shape = 's32[1]{0}', space=sflag, size = 0x4, scoped, tag = 'scoped memory for tpu_custom_call.1']
    #allocation13 [shape = 'u8[16384]{0}', space=vmem, size = 0x4000, scoped, tag = 'output window, operand 0']
    %14 = vsyncpa [#allocation3], 0
    %s15 = scalar_lea.sflag [#allocation3], 1
    %16 = vsyncpa %s15, 0
    %17 = vsyncpa [#allocation6], 0
    %s18 = scalar_lea.sflag [#allocation6], 1
    %19 = vsyncpa %s18, 0
    %20 = vsyncpa [#allocation9], 0
    %21 = vsyncpa [#allocation12], 0
    %22 = vsyncpa [#allocation4], 0
    %s23 = scalar_lea.sflag [#allocation4], 1
    %24 = vsyncpa %s23, 0
    loop: start=0, step=1, limit=4
    $region2: #{tpu_custom_call.1} parent=1 // loop_pre_header
      _
    $region3: #{tpu_custom_call.1} parent=1 // loop_header
      %s26 = sphi 0, %s30
      %p27 = scmp.ge.s32.totalorder %s26, 4
      %s36 = sphi 0, %s38
      %s39 = sphi 0, %s36
      %s40 = sphi 0, %s39
      %s56 = sphi 0, %s40
      %s62 = sphi 0, %s64
      %s65 = sphi 0, %s62
      %s66 = sphi 0, %s65
      %s82 = sphi 0, %s66
      %s86 = sphi 0, %s86
      %s88 = sphi 0, %s86
      %s89 = sphi 0, %s88
      %s103 = sphi 0, %s89
      %s107 = sphi 0, %s107
      %s109 = sphi 0, %s107
      %s110 = sphi 0, %s109
      %s124 = sphi 0, %s110
      %s128 = sphi 0, %s128
      %s130 = sphi 0, %s128
      %s131 = sphi 0, %s130
      %s145 = sphi 0, %s131
      %s149 = sphi 0, %s149
      %s151 = sphi 0, %s149
      %s152 = sphi 0, %s151
      %s166 = sphi 0, %s152
      %s170 = sphi 0, %s170
      %s172 = sphi 0, %s170
      %s173 = sphi 0, %s172
      %s187 = sphi 0, %s173
      %s191 = sphi 0, %s191
      %s193 = sphi 0, %s191
      %s194 = sphi 0, %s193
      %s208 = sphi 0, %s194
      %s212 = sphi 0, %s212
      %s214 = sphi 0, %s212
      %s215 = sphi 0, %s214
      %s229 = sphi 0, %s215
      %s235 = sphi 0, %s237
      %s238 = sphi 0, %s235
      %s239 = sphi 0, %s238
      %s255 = sphi 0, %s239
    $region4: #{tpu_custom_call.1} parent=1 // loop_header_branch
      %29 = sbr.rel (%p27) target = $region8
    $region5: #{tpu_custom_call.1} parent=1 // loop_body
      %s31 = ssub.s32 %s26, 1
      %s32 = ssub.s32 %s26, 2
      %s33 = sadd.s32 %s26, 1
      %s34 = ssub.s32 %s26, %s33
      %p35 = scmp.eq.s32.totalorder %s34, 0
      %s37 = sadd.s32 %s36, 1
      %s38 = scalar_select %p35, %s36, %s37
      %p41 = pneg %p35
      %p42 = scmp.eq.s32.totalorder %s26, 1
      %p43 = por %p41, %p42
      %p44 = scmp.ne.s32.totalorder %s36, %s39
      %p45 = scmp.eq.s32.totalorder %s26, 0
      %p46 = por %p44, %p45
      %p47 = scmp.ne.s32.totalorder %s36, %s39
      %p48 = scmp.eq.s32.totalorder %s31, 1
      %p49 = por %p47, %p48
      %p50 = scmp.ne.s32.totalorder %s39, %s40
      %p51 = scmp.eq.s32.totalorder %s31, 0
      %p52 = por %p50, %p51
      %p53 = scmp.ne.s32.totalorder %s39, %s40
      %p54 = scmp.eq.s32.totalorder %s32, 1
      %p55 = por %p53, %p54
      %p57 = scmp.ne.s32.totalorder %s40, %s56
      %p58 = scmp.eq.s32.totalorder %s32, 0
      %p59 = por %p57, %p58
      %s60 = ssub.s32 %s26, %s33
      %p61 = scmp.eq.s32.totalorder %s60, 0
      %s63 = sadd.s32 %s62, 1
      %s64 = scalar_select %p61, %s62, %s63
      %p67 = pneg %p61
      %p68 = scmp.eq.s32.totalorder %s26, 1
      %p69 = por %p67, %p68
      %p70 = scmp.ne.s32.totalorder %s62, %s65
      %p71 = scmp.eq.s32.totalorder %s26, 0
      %p72 = por %p70, %p71
      %p73 = scmp.ne.s32.totalorder %s62, %s65
      %p74 = scmp.eq.s32.totalorder %s31, 1
      %p75 = por %p73, %p74
      %p76 = scmp.ne.s32.totalorder %s65, %s66
      %p77 = scmp.eq.s32.totalorder %s31, 0
      %p78 = por %p76, %p77
      %p79 = scmp.ne.s32.totalorder %s65, %s66
      %p80 = scmp.eq.s32.totalorder %s32, 1
      %p81 = por %p79, %p80
      %p83 = scmp.ne.s32.totalorder %s66, %s82
      %p84 = scmp.eq.s32.totalorder %s32, 0
      %p85 = por %p83, %p84
      %s87 = sadd.s32 %s86, 1
      %p90 = scmp.eq.s32.totalorder %s26, 1
      %p91 = scmp.ne.s32.totalorder %s86, %s88
      %p92 = scmp.eq.s32.totalorder %s26, 0
      %p93 = por %p91, %p92
      %p94 = scmp.ne.s32.totalorder %s86, %s88
      %p95 = scmp.eq.s32.totalorder %s31, 1
      %p96 = por %p94, %p95
      %p97 = scmp.ne.s32.totalorder %s88, %s89
      %p98 = scmp.eq.s32.totalorder %s31, 0
      %p99 = por %p97, %p98
      %p100 = scmp.ne.s32.totalorder %s88, %s89
      %p101 = scmp.eq.s32.totalorder %s32, 1
      %p102 = por %p100, %p101
      %p104 = scmp.ne.s32.totalorder %s89, %s103
      %p105 = scmp.eq.s32.totalorder %s32, 0
      %p106 = por %p104, %p105
      %s108 = sadd.s32 %s107, 1
      %p111 = scmp.eq.s32.totalorder %s26, 1
      %p112 = scmp.ne.s32.totalorder %s107, %s109
      %p113 = scmp.eq.s32.totalorder %s26, 0
      %p114 = por %p112, %p113
      %p115 = scmp.ne.s32.totalorder %s107, %s109
      %p116 = scmp.eq.s32.totalorder %s31, 1
      %p117 = por %p115, %p116
      %p118 = scmp.ne.s32.totalorder %s109, %s110
      %p119 = scmp.eq.s32.totalorder %s31, 0
      %p120 = por %p118, %p119
      %p121 = scmp.ne.s32.totalorder %s109, %s110
      %p122 = scmp.eq.s32.totalorder %s32, 1
      %p123 = por %p121, %p122
      %p125 = scmp.ne.s32.totalorder %s110, %s124
      %p126 = scmp.eq.s32.totalorder %s32, 0
      %p127 = por %p125, %p126
      %s129 = sadd.s32 %s128, 1
      %p132 = scmp.eq.s32.totalorder %s26, 1
      %p133 = scmp.ne.s32.totalorder %s128, %s130
      %p134 = scmp.eq.s32.totalorder %s26, 0
      %p135 = por %p133, %p134
      %p136 = scmp.ne.s32.totalorder %s128, %s130
      %p137 = scmp.eq.s32.totalorder %s31, 1
      %p138 = por %p136, %p137
      %p139 = scmp.ne.s32.totalorder %s130, %s131
      %p140 = scmp.eq.s32.totalorder %s31, 0
      %p141 = por %p139, %p140
      %p142 = scmp.ne.s32.totalorder %s130, %s131
      %p143 = scmp.eq.s32.totalorder %s32, 1
      %p144 = por %p142, %p143
      %p146 = scmp.ne.s32.totalorder %s131, %s145
      %p147 = scmp.eq.s32.totalorder %s32, 0
      %p148 = por %p146, %p147
      %s150 = sadd.s32 %s149, 1
      %p153 = scmp.eq.s32.totalorder %s26, 1
      %p154 = scmp.ne.s32.totalorder %s149, %s151
      %p155 = scmp.eq.s32.totalorder %s26, 0
      %p156 = por %p154, %p155
      %p157 = scmp.ne.s32.totalorder %s149, %s151
      %p158 = scmp.eq.s32.totalorder %s31, 1
      %p159 = por %p157, %p158
      %p160 = scmp.ne.s32.totalorder %s151, %s152
      %p161 = scmp.eq.s32.totalorder %s31, 0
      %p162 = por %p160, %p161
      %p163 = scmp.ne.s32.totalorder %s151, %s152
      %p164 = scmp.eq.s32.totalorder %s32, 1
      %p165 = por %p163, %p164
      %p167 = scmp.ne.s32.totalorder %s152, %s166
      %p168 = scmp.eq.s32.totalorder %s32, 0
      %p169 = por %p167, %p168
      %s171 = sadd.s32 %s170, 1
      %p174 = scmp.eq.s32.totalorder %s26, 1
      %p175 = scmp.ne.s32.totalorder %s170, %s172
      %p176 = scmp.eq.s32.totalorder %s26, 0
      %p177 = por %p175, %p176
      %p178 = scmp.ne.s32.totalorder %s170, %s172
      %p179 = scmp.eq.s32.totalorder %s31, 1
      %p180 = por %p178, %p179
      %p181 = scmp.ne.s32.totalorder %s172, %s173
      %p182 = scmp.eq.s32.totalorder %s31, 0
      %p183 = por %p181, %p182
      %p184 = scmp.ne.s32.totalorder %s172, %s173
      %p185 = scmp.eq.s32.totalorder %s32, 1
      %p186 = por %p184, %p185
      %p188 = scmp.ne.s32.totalorder %s173, %s187
      %p189 = scmp.eq.s32.totalorder %s32, 0
      %p190 = por %p188, %p189
      %s192 = sadd.s32 %s191, 1
      %p195 = scmp.eq.s32.totalorder %s26, 1
      %p196 = scmp.ne.s32.totalorder %s191, %s193
      %p197 = scmp.eq.s32.totalorder %s26, 0
      %p198 = por %p196, %p197
      %p199 = scmp.ne.s32.totalorder %s191, %s193
      %p200 = scmp.eq.s32.totalorder %s31, 1
      %p201 = por %p199, %p200
      %p202 = scmp.ne.s32.totalorder %s193, %s194
      %p203 = scmp.eq.s32.totalorder %s31, 0
      %p204 = por %p202, %p203
      %p205 = scmp.ne.s32.totalorder %s193, %s194
      %p206 = scmp.eq.s32.totalorder %s32, 1
      %p207 = por %p205, %p206
      %p209 = scmp.ne.s32.totalorder %s194, %s208
      %p210 = scmp.eq.s32.totalorder %s32, 0
      %p211 = por %p209, %p210
      %s213 = sadd.s32 %s212, 1
      %p216 = scmp.eq.s32.totalorder %s26, 1
      %p217 = scmp.ne.s32.totalorder %s212, %s214
      %p218 = scmp.eq.s32.totalorder %s26, 0
      %p219 = por %p217, %p218
      %p220 = scmp.ne.s32.totalorder %s212, %s214
      %p221 = scmp.eq.s32.totalorder %s31, 1
      %p222 = por %p220, %p221
      %p223 = scmp.ne.s32.totalorder %s214, %s215
      %p224 = scmp.eq.s32.totalorder %s31, 0
      %p225 = por %p223, %p224
      %p226 = scmp.ne.s32.totalorder %s214, %s215
      %p227 = scmp.eq.s32.totalorder %s32, 1
      %p228 = por %p226, %p227
      %p230 = scmp.ne.s32.totalorder %s215, %s229
      %p231 = scmp.eq.s32.totalorder %s32, 0
      %p232 = por %p230, %p231
      %s233 = ssub.s32 %s26, %s33
      %p234 = scmp.eq.s32.totalorder %s233, 0
      %s236 = sadd.s32 %s235, 1
      %s237 = scalar_select %p234, %s235, %s236
      %p240 = pneg %p234
      %p241 = scmp.eq.s32.totalorder %s26, 1
      %p242 = por %p240, %p241
      %p243 = scmp.ne.s32.totalorder %s235, %s238
      %p244 = scmp.eq.s32.totalorder %s26, 0
      %p245 = por %p243, %p244
      %p246 = scmp.ne.s32.totalorder %s235, %s238
      %p247 = scmp.eq.s32.totalorder %s31, 1
      %p248 = por %p246, %p247
      %p249 = scmp.ne.s32.totalorder %s238, %s239
      %p250 = scmp.eq.s32.totalorder %s31, 0
      %p251 = por %p249, %p250
      %p252 = scmp.ne.s32.totalorder %s238, %s239
      %p253 = scmp.eq.s32.totalorder %s32, 1
      %p254 = por %p252, %p253
      %p256 = scmp.ne.s32.totalorder %s239, %s255
      %p257 = scmp.eq.s32.totalorder %s32, 0
      %p258 = por %p256, %p257
      %p259 = scmp.le.s32.totalorder 1, %s26
      %p260 = scmp.lt.s32.totalorder %s26, 3
      %p261 = pnand %p259, %p260
      %p262 = pneg %p261
      // Predicated region
      $region9: #{tpu_custom_call.1} parent=5 // pred_check
        _
      $region10: #{tpu_custom_call.1} parent=5 // pred_check_branch
        %264 = sbr.rel (%p261) target = $region12
      $region11: #{tpu_custom_call.1} parent=5 // pred_region
        %s265 = ssub.s32 %s26, 1
        // Predicated region
        $region13: #{tpu_custom_call.1} parent=11 // pred_check
          %p266 = pneg %p99
        $region14: #{tpu_custom_call.1} parent=11 // pred_check_branch
          %268 = sbr.rel (%p266) target = $region16
        $region15: #{tpu_custom_call.1} parent=11 // pred_region
          %s270 = ssub.s32 4096, 4096
          %271 = vsyncadd [#allocation6], %s270
          %s272 = sshll.u32 [#allocation7], 4
          %s273 = int_to_ptr.vmem [resolvable:$true] %s272
          %278 = dma.hbm_to_vmem [thread:$0]  %s2, 4096, %s273, [#allocation6], 128, 128, 8
        $region16: #{tpu_custom_call.1} parent=11 // pred_fallthru
          _
        // Predicated region
        $region17: #{tpu_custom_call.1} parent=11 // pred_check
          %p279 = pneg %p120
        $region18: #{tpu_custom_call.1} parent=11 // pred_check_branch
          %281 = sbr.rel (%p279) target = $region20
        $region19: #{tpu_custom_call.1} parent=11 // pred_region
          _
        $region20: #{tpu_custom_call.1} parent=11 // pred_fallthru
          _
        // Predicated region
        $region21: #{tpu_custom_call.1} parent=11 // pred_check
          %p282 = pneg %p141
        $region22: #{tpu_custom_call.1} parent=11 // pred_check_branch
          %284 = sbr.rel (%p282) target = $region24
        $region23: #{tpu_custom_call.1} parent=11 // pred_region
          %s286 = ssub.s32 8192, 8192
          %287 = vsyncadd [#allocation9], %s286
          %s288 = sshll.u32 [#allocation8], 4
          %s289 = int_to_ptr.vmem [resolvable:$true] %s288
          %294 = dma.hbm_to_vmem [thread:$0]  %s4, 8192, %s289, [#allocation9], 256, 256, 16
        $region24: #{tpu_custom_call.1} parent=11 // pred_fallthru
          _
        // Predicated region
        $region25: #{tpu_custom_call.1} parent=11 // pred_check
          %p295 = pneg %p162
        $region26: #{tpu_custom_call.1} parent=11 // pred_check_branch
          %297 = sbr.rel (%p295) target = $region28
        $region27: #{tpu_custom_call.1} parent=11 // pred_region
          _
        $region28: #{tpu_custom_call.1} parent=11 // pred_fallthru
          _
        // Predicated region
        $region29: #{tpu_custom_call.1} parent=11 // pred_check
          %p298 = pneg %p183
        $region30: #{tpu_custom_call.1} parent=11 // pred_check_branch
          %300 = sbr.rel (%p298) target = $region32
        $region31: #{tpu_custom_call.1} parent=11 // pred_region
          %s302 = ssub.s32 4096, 4096
          %303 = vsyncadd [#allocation9], %s302
          %s304 = sshll.u32 [#allocation10], 4
          %s305 = int_to_ptr.vmem [resolvable:$true] %s304
          %310 = dma.hbm_to_vmem [thread:$0]  %s6, 4096, %s305, [#allocation9], 128, 128, 8
        $region32: #{tpu_custom_call.1} parent=11 // pred_fallthru
          _
        // Predicated region
        $region33: #{tpu_custom_call.1} parent=11 // pred_check
          %p311 = pneg %p204
        $region34: #{tpu_custom_call.1} parent=11 // pred_check_branch
          %313 = sbr.rel (%p311) target = $region36
        $region35: #{tpu_custom_call.1} parent=11 // pred_region
          _
        $region36: #{tpu_custom_call.1} parent=11 // pred_fallthru
          _
        // Predicated region
        $region37: #{tpu_custom_call.1} parent=11 // pred_check
          %p314 = pneg %p225
        $region38: #{tpu_custom_call.1} parent=11 // pred_check_branch
          %316 = sbr.rel (%p314) target = $region40
        $region39: #{tpu_custom_call.1} parent=11 // pred_region
          %s318 = ssub.s32 1024, 1024
          %319 = vsyncadd [#allocation12], %s318
          %s320 = sshll.u32 [#allocation11], 4
          %s321 = int_to_ptr.vmem [resolvable:$true] %s320
          %326 = dma.hbm_to_vmem [thread:$0]  %s8, 1024, %s321, [#allocation12], 128, 128, 8
        $region40: #{tpu_custom_call.1} parent=11 // pred_fallthru
          _
      $region12: #{tpu_custom_call.1} parent=5 // pred_fallthru
        _
      %p327 = scmp.lt.s32.totalorder %s26, 2
      // Predicated region
      $region41: #{tpu_custom_call.1} parent=5 // pred_check
        %p328 = pneg %p327
      $region42: #{tpu_custom_call.1} parent=5 // pred_check_branch
        %330 = sbr.rel (%p328) target = $region44
      $region43: #{tpu_custom_call.1} parent=5 // pred_region
        // Predicated region
        $region45: #{tpu_custom_call.1} parent=43 // pred_check
          %p331 = pneg %p46
        $region46: #{tpu_custom_call.1} parent=43 // pred_check_branch
          %333 = sbr.rel (%p331) target = $region48
        $region47: #{tpu_custom_call.1} parent=43 // pred_region
          %s334 = sand.u32 %s36, 1
          %s335 = scalar_lea.sflag [#allocation3], %s334
          %s336 = sand.u32 %s36, 1
          %s337 = smul.addr %s336, 8
          %s338 = scalar_lea.vmem [#allocation2], %s337
          %s340 = ssub.s32 128, 128
          %341 = vsyncadd %s335, %s340
          %s342 = smul.addr %s26, 2
          %s343 = smul.addr %s342, 64
          %s344 = scalar_lea.hbm %s0, %s343
          %s346 = sshll.u32 %s338, 4
          %s347 = int_to_ptr.vmem [resolvable:$true] %s346
          %349 = dma.hbm_to_vmem [thread:$0]  %s344, 128, %s347, %s335
        $region48: #{tpu_custom_call.1} parent=43 // pred_fallthru
          _
        // Predicated region
        $region49: #{tpu_custom_call.1} parent=43 // pred_check
          %p350 = pneg %p72
        $region50: #{tpu_custom_call.1} parent=43 // pred_check_branch
          %352 = sbr.rel (%p350) target = $region52
        $region51: #{tpu_custom_call.1} parent=43 // pred_region
          %s353 = sand.u32 %s26, 1
          %s354 = scalar_lea.sflag [#allocation6], %s353
          %s355 = sand.u32 %s62, 1
          %s356 = smul.addr %s355, 8
          %s357 = scalar_lea.vmem [#allocation5], %s356
          %s359 = ssub.s32 128, 128
          %360 = vsyncadd %s354, %s359
          %s361 = smul.addr %s26, 2
          %s362 = smul.addr %s361, 64
          %s363 = scalar_lea.hbm %s1, %s362
          %s365 = sshll.u32 %s357, 4
          %s366 = int_to_ptr.vmem [resolvable:$true] %s365
          %368 = dma.hbm_to_vmem [thread:$0]  %s363, 128, %s366, %s354
        $region52: #{tpu_custom_call.1} parent=43 // pred_fallthru
          _
      $region44: #{tpu_custom_call.1} parent=5 // pred_fallthru
        _
      %p369 = scmp.le.s32.totalorder 1, %s26
      %p370 = scmp.lt.s32.totalorder %s26, 3
      %p371 = pnand %p369, %p370
      %p372 = pneg %p371
      // Predicated region
      $region53: #{tpu_custom_call.1} parent=5 // pred_check
        _
      $region54: #{tpu_custom_call.1} parent=5 // pred_check_branch
        %374 = sbr.rel (%p371) target = $region56
      $region55: #{tpu_custom_call.1} parent=5 // pred_region
        %s375 = ssub.s32 %s26, 1
        %s376 = sand.u32 %s39, 1
        %s377 = scalar_lea.sflag [#allocation3], %s376
        %s378 = sand.u32 %s39, 1
        %s379 = smul.addr %s378, 8
        %s380 = scalar_lea.vmem [#allocation2], %s379
        // Predicated region
        $region57: #{tpu_custom_call.1} parent=55 // pred_check
          %p381 = pneg %p52
        $region58: #{tpu_custom_call.1} parent=55 // pred_check_branch
          %383 = sbr.rel (%p381) target = $region60
        $region59: #{tpu_custom_call.1} parent=55 // pred_region
          %384 = dma.done %s377, 128
        $region60: #{tpu_custom_call.1} parent=55 // pred_fallthru
          _
        %s385 = sand.u32 %s31, 1
        %s386 = scalar_lea.sflag [#allocation6], %s385
        %s387 = sand.u32 %s65, 1
        %s388 = smul.addr %s387, 8
        %s389 = scalar_lea.vmem [#allocation5], %s388
        // Predicated region
        $region61: #{tpu_custom_call.1} parent=55 // pred_check
          %p390 = pneg %p78
        $region62: #{tpu_custom_call.1} parent=55 // pred_check_branch
          %392 = sbr.rel (%p390) target = $region64
        $region63: #{tpu_custom_call.1} parent=55 // pred_region
          %393 = dma.done %s386, 128
        $region64: #{tpu_custom_call.1} parent=55 // pred_fallthru
          _
        // Predicated region
        $region65: #{tpu_custom_call.1} parent=55 // pred_check
          %p394 = pneg %p99
        $region66: #{tpu_custom_call.1} parent=55 // pred_check_branch
          %396 = sbr.rel (%p394) target = $region68
        $region67: #{tpu_custom_call.1} parent=55 // pred_region
          %397 = dma.done [#allocation6], 4096
        $region68: #{tpu_custom_call.1} parent=55 // pred_fallthru
          _
        // Predicated region
        $region69: #{tpu_custom_call.1} parent=55 // pred_check
          %p398 = pneg %p141
        $region70: #{tpu_custom_call.1} parent=55 // pred_check_branch
          %400 = sbr.rel (%p398) target = $region72
        $region71: #{tpu_custom_call.1} parent=55 // pred_region
          %401 = dma.done [#allocation9], 8192
        $region72: #{tpu_custom_call.1} parent=55 // pred_fallthru
          _
        // Predicated region
        $region73: #{tpu_custom_call.1} parent=55 // pred_check
          %p402 = pneg %p183
        $region74: #{tpu_custom_call.1} parent=55 // pred_check_branch
          %404 = sbr.rel (%p402) target = $region76
        $region75: #{tpu_custom_call.1} parent=55 // pred_region
          %405 = dma.done [#allocation9], 4096
        $region76: #{tpu_custom_call.1} parent=55 // pred_fallthru
          _
        // Predicated region
        $region77: #{tpu_custom_call.1} parent=55 // pred_check
          %p406 = pneg %p225
        $region78: #{tpu_custom_call.1} parent=55 // pred_check_branch
          %408 = sbr.rel (%p406) target = $region80
        $region79: #{tpu_custom_call.1} parent=55 // pred_region
          %409 = dma.done [#allocation12], 1024
        $region80: #{tpu_custom_call.1} parent=55 // pred_fallthru
          _
        %s410 = sand.u32 %s39, 1
        %s411 = scalar_lea.sflag [#allocation3], %s410
        %s412 = sand.u32 %s39, 1
        %s413 = smul.addr %s412, 8
        %s414 = scalar_lea.vmem [#allocation2], %s413
        %p415 = pneg %p52
        %p416 = pneg %p49
        %s417 = sand.u32 %s31, 1
        %s418 = scalar_lea.sflag [#allocation6], %s417
        %s419 = sand.u32 %s65, 1
        %s420 = smul.addr %s419, 8
        %s421 = scalar_lea.vmem [#allocation5], %s420
        %p422 = pneg %p78
        %p423 = pneg %p75
        %p424 = pneg %p99
        %p425 = pneg %p96
        %p426 = pneg %p120
        %p427 = pneg %p117
        %p428 = pneg %p141
        %p429 = pneg %p138
        %p430 = pneg %p162
        %p431 = pneg %p159
        %p432 = pneg %p183
        %p433 = pneg %p180
        %p434 = pneg %p204
        %p435 = pneg %p201
        %p436 = pneg %p225
        %p437 = pneg %p222
        %p438 = pneg %p251
        %p439 = pneg %p248
        %s440 = sand.u32 %s238, 1
        %s441 = scalar_lea.sflag [#allocation4], %s440
        %s442 = sand.u32 %s238, 1
        %s443 = smul.addr %s442, 16
        %s444 = scalar_lea.vmem [#allocation13], %s443
        %v446 = vld [vmem:[%s380] sm:$0xff]
        %v447 = vld [vmem:[%s389] sm:$0xff]
        %v448 = vld [vmem:[#allocation7] sm:$0xff]
        %v449 = vld [vmem:[#allocation7 + $0x8] sm:$0xff]
        %v450 = vld [vmem:[#allocation7 + $0x10] sm:$0xff]
        %v451 = vld [vmem:[#allocation7 + $0x18] sm:$0xff]
        %v452 = vld [vmem:[#allocation7 + $0x20] sm:$0xff]
        %v453 = vld [vmem:[#allocation7 + $0x28] sm:$0xff]
        %v454 = vld [vmem:[#allocation7 + $0x30] sm:$0xff]
        %v455 = vld [vmem:[#allocation7 + $0x38] sm:$0xff]
        %v456 = vld [vmem:[#allocation7 + $0x40] sm:$0xff]
        %v457 = vld [vmem:[#allocation7 + $0x48] sm:$0xff]
        %v458 = vld [vmem:[#allocation7 + $0x50] sm:$0xff]
        %v459 = vld [vmem:[#allocation7 + $0x58] sm:$0xff]
        %v460 = vld [vmem:[#allocation7 + $0x60] sm:$0xff]
        %v461 = vld [vmem:[#allocation7 + $0x68] sm:$0xff]
        %v462 = vld [vmem:[#allocation7 + $0x70] sm:$0xff]
        %v463 = vld [vmem:[#allocation7 + $0x78] sm:$0xff]
        %v464 = vld [vmem:[#allocation7 + $0x80] sm:$0xff]
        %v465 = vld [vmem:[#allocation7 + $0x88] sm:$0xff]
        %v466 = vld [vmem:[#allocation7 + $0x90] sm:$0xff]
        %v467 = vld [vmem:[#allocation7 + $0x98] sm:$0xff]
        %v468 = vld [vmem:[#allocation7 + $0xa0] sm:$0xff]
        %v469 = vld [vmem:[#allocation7 + $0xa8] sm:$0xff]
        %v470 = vld [vmem:[#allocation7 + $0xb0] sm:$0xff]
        %v471 = vld [vmem:[#allocation7 + $0xb8] sm:$0xff]
        %v472 = vld [vmem:[#allocation7 + $0xc0] sm:$0xff]
        %v473 = vld [vmem:[#allocation7 + $0xc8] sm:$0xff]
        %v474 = vld [vmem:[#allocation7 + $0xd0] sm:$0xff]
        %v475 = vld [vmem:[#allocation7 + $0xd8] sm:$0xff]
        %v476 = vld [vmem:[#allocation7 + $0xe0] sm:$0xff]
        %v477 = vld [vmem:[#allocation7 + $0xe8] sm:$0xff]
        %v478 = vld [vmem:[#allocation7 + $0xf0] sm:$0xff]
        %v479 = vld [vmem:[#allocation7 + $0xf8] sm:$0xff]
        %v480 = vld [vmem:[%s3] sm:$0x3]
        %v482 = vlaneseq
        %v483 = vshrl.u32 %v482, 7
        %v484 = vsub.s32 0, %v483
        %v485 = vrot.slane %v480, %v484
        %v486 = vlaneseq
        %v487 = vshrl.u32 %v486, 7
        %v488 = vsub.s32 1, %v487
        %v489 = vrot.slane %v480, %v488
        %v493 = vunpack.c.l.b16 %v446
        %v494 = vunpack.c.h.b16 %v446
        %v495 = vpack.c.b16 %v493, %v493
        %v496 = vpack.c.b16 %v494, %v494
        %v531 = vunpack.c.l.b16 %v448
        %v532 = vunpack.c.h.b16 %v448
        %v533 = vunpack.c.l.b16 %v449
        %v534 = vunpack.c.h.b16 %v449
        %v535 = vunpack.c.l.b16 %v450
        %v536 = vunpack.c.h.b16 %v450
        %v537 = vunpack.c.l.b16 %v451
        %v538 = vunpack.c.h.b16 %v451
        %v539 = vunpack.c.l.b16 %v452
        %v540 = vunpack.c.h.b16 %v452
        %v541 = vunpack.c.l.b16 %v453
        %v542 = vunpack.c.h.b16 %v453
        %v543 = vunpack.c.l.b16 %v454
        %v544 = vunpack.c.h.b16 %v454
        %v545 = vunpack.c.l.b16 %v455
        %v546 = vunpack.c.h.b16 %v455
        %v547 = vunpack.c.l.b16 %v456
        %v548 = vunpack.c.h.b16 %v456
        %v549 = vunpack.c.l.b16 %v457
        %v550 = vunpack.c.h.b16 %v457
        %v551 = vunpack.c.l.b16 %v458
        %v552 = vunpack.c.h.b16 %v458
        %v553 = vunpack.c.l.b16 %v459
        %v554 = vunpack.c.h.b16 %v459
        %v555 = vunpack.c.l.b16 %v460
        %v556 = vunpack.c.h.b16 %v460
        %v557 = vunpack.c.l.b16 %v461
        %v558 = vunpack.c.h.b16 %v461
        %v559 = vunpack.c.l.b16 %v462
        %v560 = vunpack.c.h.b16 %v462
        %v561 = vunpack.c.l.b16 %v463
        %v562 = vunpack.c.h.b16 %v463
        %v563 = vunpack.c.l.b16 %v464
        %v564 = vunpack.c.h.b16 %v464
        %v565 = vunpack.c.l.b16 %v465
        %v566 = vunpack.c.h.b16 %v465
        %v567 = vunpack.c.l.b16 %v466
        %v568 = vunpack.c.h.b16 %v466
        %v569 = vunpack.c.l.b16 %v467
        %v570 = vunpack.c.h.b16 %v467
        %v571 = vunpack.c.l.b16 %v468
        %v572 = vunpack.c.h.b16 %v468
        %v573 = vunpack.c.l.b16 %v469
        %v574 = vunpack.c.h.b16 %v469
        %v575 = vunpack.c.l.b16 %v470
        %v576 = vunpack.c.h.b16 %v470
        %v577 = vunpack.c.l.b16 %v471
        %v578 = vunpack.c.h.b16 %v471
        %v579 = vunpack.c.l.b16 %v472
        %v580 = vunpack.c.h.b16 %v472
        %v581 = vunpack.c.l.b16 %v473
        %v582 = vunpack.c.h.b16 %v473
        %v583 = vunpack.c.l.b16 %v474
        %v584 = vunpack.c.h.b16 %v474
        %v585 = vunpack.c.l.b16 %v475
        %v586 = vunpack.c.h.b16 %v475
        %v587 = vunpack.c.l.b16 %v476
        %v588 = vunpack.c.h.b16 %v476
        %v589 = vunpack.c.l.b16 %v477
        %v590 = vunpack.c.h.b16 %v477
        %v591 = vunpack.c.l.b16 %v478
        %v592 = vunpack.c.h.b16 %v478
        %v593 = vunpack.c.l.b16 %v479
        %v594 = vunpack.c.h.b16 %v479
        %v595 = vpack.c.b16 %v533, %v531
        %v596 = vpack.c.b16 %v534, %v532
        %v597 = vpack.c.b16 %v537, %v535
        %v598 = vpack.c.b16 %v538, %v536
        %v599 = vpack.c.b16 %v541, %v539
        %v600 = vpack.c.b16 %v542, %v540
        %v601 = vpack.c.b16 %v545, %v543
        %v602 = vpack.c.b16 %v546, %v544
        %v603 = vpack.c.b16 %v549, %v547
        %v604 = vpack.c.b16 %v550, %v548
        %v605 = vpack.c.b16 %v553, %v551
        %v606 = vpack.c.b16 %v554, %v552
        %v607 = vpack.c.b16 %v557, %v555
        %v608 = vpack.c.b16 %v558, %v556
        %v609 = vpack.c.b16 %v561, %v559
        %v610 = vpack.c.b16 %v562, %v560
        %v611 = vpack.c.b16 %v565, %v563
        %v612 = vpack.c.b16 %v566, %v564
        %v613 = vpack.c.b16 %v569, %v567
        %v614 = vpack.c.b16 %v570, %v568
        %v615 = vpack.c.b16 %v573, %v571
        %v616 = vpack.c.b16 %v574, %v572
        %v617 = vpack.c.b16 %v577, %v575
        %v618 = vpack.c.b16 %v578, %v576
        %v619 = vpack.c.b16 %v581, %v579
        %v620 = vpack.c.b16 %v582, %v580
        %v621 = vpack.c.b16 %v585, %v583
        %v622 = vpack.c.b16 %v586, %v584
        %v623 = vpack.c.b16 %v589, %v587
        %v624 = vpack.c.b16 %v590, %v588
        %v625 = vpack.c.b16 %v593, %v591
        %v626 = vpack.c.b16 %v594, %v592
        %659 = vmatprep.subr.bf16.mxu0 %v596
        %660 = vmatpush1.bf16.msra.mxu0 %v595
        %661 = vmatprep.subr.bf16.mxu0 %v598
        %662 = vmatpush1.bf16.msra.mxu0 %v597
        %663 = vmatprep.subr.bf16.mxu0 %v600
        %664 = vmatpush1.bf16.msra.mxu0 %v599
        %665 = vmatprep.subr.bf16.mxu0 %v602
        %666 = vmatpush1.bf16.msra.mxu0 %v601
        %667 = vmatprep.subr.bf16.mxu0 %v604
        %668 = vmatpush1.bf16.msra.mxu0 %v603
        %669 = vmatprep.subr.bf16.mxu0 %v606
        %670 = vmatpush1.bf16.msra.mxu0 %v605
        %671 = vmatprep.subr.bf16.mxu0 %v608
        %672 = vmatpush1.bf16.msra.mxu0 %v607
        %673 = vmatprep.subr.bf16.mxu0 %v610
        %674 = vmatpush1.bf16.msra.mxu0 %v609
        %675 = vmatprep.subr.bf16.mxu0 %v612
        %676 = vmatpush1.bf16.msra.mxu0 %v611
        %677 = vmatprep.subr.bf16.mxu0 %v614
        %678 = vmatpush1.bf16.msra.mxu0 %v613
        %679 = vmatprep.subr.bf16.mxu0 %v616
        %680 = vmatpush1.bf16.msra.mxu0 %v615
        %681 = vmatprep.subr.bf16.mxu0 %v618
        %682 = vmatpush1.bf16.msra.mxu0 %v617
        %683 = vmatprep.subr.bf16.mxu0 %v620
        %684 = vmatpush1.bf16.msra.mxu0 %v619
        %685 = vmatprep.subr.bf16.mxu0 %v622
        %686 = vmatpush1.bf16.msra.mxu0 %v621
        %687 = vmatprep.subr.bf16.mxu0 %v624
        %688 = vmatpush1.bf16.msra.mxu0 %v623
        %689 = vmatprep.subr.bf16.mxu0 %v626
        %690 = vmatpush1.bf16.msra.mxu0 %v625
        %691 = vmatprep.mubr.bf16.mxu0 %v496
        %692 = vmatmul.mubr.bf16.gmra.mrb[0].mxu0 %v495
        %v693 = vpop.f32.mrb[0].mxu0
        %v694 = vadd.f32 %v485, %v693
        %v695 = vpop.f32.mrb[0].mxu0
        %v696 = vadd.f32 %v489, %v695
        %v697 = vpop.f32.mrb[0].mxu0
        %v698 = vpop.f32.mrb[0].mxu0
        %699 = vdwg.mxu0
        %v700 = vld [vmem:[#allocation8] sm:$0xff]
        %v701 = vld [vmem:[#allocation8 + $0x8] sm:$0xff]
        %v702 = vld [vmem:[#allocation8 + $0x10] sm:$0xff]
        %v703 = vld [vmem:[#allocation8 + $0x18] sm:$0xff]
        %v704 = vld [vmem:[#allocation8 + $0x20] sm:$0xff]
        %v705 = vld [vmem:[#allocation8 + $0x28] sm:$0xff]
        %v706 = vld [vmem:[#allocation8 + $0x30] sm:$0xff]
        %v707 = vld [vmem:[#allocation8 + $0x38] sm:$0xff]
        %v708 = vld [vmem:[#allocation8 + $0x40] sm:$0xff]
        %v709 = vld [vmem:[#allocation8 + $0x48] sm:$0xff]
        %v710 = vld [vmem:[#allocation8 + $0x50] sm:$0xff]
        %v711 = vld [vmem:[#allocation8 + $0x58] sm:$0xff]
        %v712 = vld [vmem:[#allocation8 + $0x60] sm:$0xff]
        %v713 = vld [vmem:[#allocation8 + $0x68] sm:$0xff]
        %v714 = vld [vmem:[#allocation8 + $0x70] sm:$0xff]
        %v715 = vld [vmem:[#allocation8 + $0x78] sm:$0xff]
        %v716 = vld [vmem:[#allocation8 + $0x80] sm:$0xff]
        %v717 = vld [vmem:[#allocation8 + $0x88] sm:$0xff]
        %v718 = vld [vmem:[#allocation8 + $0x90] sm:$0xff]
        %v719 = vld [vmem:[#allocation8 + $0x98] sm:$0xff]
        %v720 = vld [vmem:[#allocation8 + $0xa0] sm:$0xff]
        %v721 = vld [vmem:[#allocation8 + $0xa8] sm:$0xff]
        %v722 = vld [vmem:[#allocation8 + $0xb0] sm:$0xff]
        %v723 = vld [vmem:[#allocation8 + $0xb8] sm:$0xff]
        %v724 = vld [vmem:[#allocation8 + $0xc0] sm:$0xff]
        %v725 = vld [vmem:[#allocation8 + $0xc8] sm:$0xff]
        %v726 = vld [vmem:[#allocation8 + $0xd0] sm:$0xff]
        %v727 = vld [vmem:[#allocation8 + $0xd8] sm:$0xff]
        %v728 = vld [vmem:[#allocation8 + $0xe0] sm:$0xff]
        %v729 = vld [vmem:[#allocation8 + $0xe8] sm:$0xff]
        %v730 = vld [vmem:[#allocation8 + $0xf0] sm:$0xff]
        %v731 = vld [vmem:[#allocation8 + $0xf8] sm:$0xff]
        %v732 = vld [vmem:[#allocation8 + $0x100] sm:$0xff]
        %v733 = vld [vmem:[#allocation8 + $0x108] sm:$0xff]
        %v734 = vld [vmem:[#allocation8 + $0x110] sm:$0xff]
        %v735 = vld [vmem:[#allocation8 + $0x118] sm:$0xff]
        %v736 = vld [vmem:[#allocation8 + $0x120] sm:$0xff]
        %v737 = vld [vmem:[#allocation8 + $0x128] sm:$0xff]
        %v738 = vld [vmem:[#allocation8 + $0x130] sm:$0xff]
        %v739 = vld [vmem:[#allocation8 + $0x138] sm:$0xff]
        %v740 = vld [vmem:[#allocation8 + $0x140] sm:$0xff]
        %v741 = vld [vmem:[#allocation8 + $0x148] sm:$0xff]
        %v742 = vld [vmem:[#allocation8 + $0x150] sm:$0xff]
        %v743 = vld [vmem:[#allocation8 + $0x158] sm:$0xff]
        %v744 = vld [vmem:[#allocation8 + $0x160] sm:$0xff]
        %v745 = vld [vmem:[#allocation8 + $0x168] sm:$0xff]
        %v746 = vld [vmem:[#allocation8 + $0x170] sm:$0xff]
        %v747 = vld [vmem:[#allocation8 + $0x178] sm:$0xff]
        %v748 = vld [vmem:[#allocation8 + $0x180] sm:$0xff]
        %v749 = vld [vmem:[#allocation8 + $0x188] sm:$0xff]
        %v750 = vld [vmem:[#allocation8 + $0x190] sm:$0xff]
        %v751 = vld [vmem:[#allocation8 + $0x198] sm:$0xff]
        %v752 = vld [vmem:[#allocation8 + $0x1a0] sm:$0xff]
        %v753 = vld [vmem:[#allocation8 + $0x1a8] sm:$0xff]
        %v754 = vld [vmem:[#allocation8 + $0x1b0] sm:$0xff]
        %v755 = vld [vmem:[#allocation8 + $0x1b8] sm:$0xff]
        %v756 = vld [vmem:[#allocation8 + $0x1c0] sm:$0xff]
        %v757 = vld [vmem:[#allocation8 + $0x1c8] sm:$0xff]
        %v758 = vld [vmem:[#allocation8 + $0x1d0] sm:$0xff]
        %v759 = vld [vmem:[#allocation8 + $0x1d8] sm:$0xff]
        %v760 = vld [vmem:[#allocation8 + $0x1e0] sm:$0xff]
        %v761 = vld [vmem:[#allocation8 + $0x1e8] sm:$0xff]
        %v762 = vld [vmem:[#allocation8 + $0x1f0] sm:$0xff]
        %v763 = vld [vmem:[#allocation8 + $0x1f8] sm:$0xff]
        %v764 = vld [vmem:[%s5] sm:$0xf]
        %v766 = vlaneseq
        %v767 = vshrl.u32 %v766, 7
        %v768 = vsub.s32 0, %v767
        %v769 = vrot.slane %v764, %v768
        %v770 = vlaneseq
        %v771 = vshrl.u32 %v770, 7
        %v772 = vsub.s32 1, %v771
        %v773 = vrot.slane %v764, %v772
        %v774 = vlaneseq
        %v775 = vshrl.u32 %v774, 7
        %v776 = vsub.s32 2, %v775
        %v777 = vrot.slane %v764, %v776
        %v778 = vlaneseq
        %v779 = vshrl.u32 %v778, 7
        %v780 = vsub.s32 3, %v779
        %v781 = vrot.slane %v764, %v780
        %v787 = vunpack.c.l.b16 %v447
        %v788 = vunpack.c.h.b16 %v447
        %v789 = vpack.c.b16 %v787, %v787
        %v790 = vpack.c.b16 %v788, %v788
        %v857 = vunpack.c.l.b16 %v700
        %v858 = vunpack.c.h.b16 %v700
        %v859 = vunpack.c.l.b16 %v701
        %v860 = vunpack.c.h.b16 %v701
        %v861 = vunpack.c.l.b16 %v702
        %v862 = vunpack.c.h.b16 %v702
        %v863 = vunpack.c.l.b16 %v703
        %v864 = vunpack.c.h.b16 %v703
        %v865 = vunpack.c.l.b16 %v704
        %v866 = vunpack.c.h.b16 %v704
        %v867 = vunpack.c.l.b16 %v705
        %v868 = vunpack.c.h.b16 %v705
        %v869 = vunpack.c.l.b16 %v706
        %v870 = vunpack.c.h.b16 %v706
        %v871 = vunpack.c.l.b16 %v707
        %v872 = vunpack.c.h.b16 %v707
        %v873 = vunpack.c.l.b16 %v708
        %v874 = vunpack.c.h.b16 %v708
        %v875 = vunpack.c.l.b16 %v709
        %v876 = vunpack.c.h.b16 %v709
        %v877 = vunpack.c.l.b16 %v710
        %v878 = vunpack.c.h.b16 %v710
        %v879 = vunpack.c.l.b16 %v711
        %v880 = vunpack.c.h.b16 %v711
        %v881 = vunpack.c.l.b16 %v712
        %v882 = vunpack.c.h.b16 %v712
        %v883 = vunpack.c.l.b16 %v713
        %v884 = vunpack.c.h.b16 %v713
        %v885 = vunpack.c.l.b16 %v714
        %v886 = vunpack.c.h.b16 %v714
        %v887 = vunpack.c.l.b16 %v715
        %v888 = vunpack.c.h.b16 %v715
        %v889 = vunpack.c.l.b16 %v716
        %v890 = vunpack.c.h.b16 %v716
        %v891 = vunpack.c.l.b16 %v717
        %v892 = vunpack.c.h.b16 %v717
        %v893 = vunpack.c.l.b16 %v718
        %v894 = vunpack.c.h.b16 %v718
        %v895 = vunpack.c.l.b16 %v719
        %v896 = vunpack.c.h.b16 %v719
        %v897 = vunpack.c.l.b16 %v720
        %v898 = vunpack.c.h.b16 %v720
        %v899 = vunpack.c.l.b16 %v721
        %v900 = vunpack.c.h.b16 %v721
        %v901 = vunpack.c.l.b16 %v722
        %v902 = vunpack.c.h.b16 %v722
        %v903 = vunpack.c.l.b16 %v723
        %v904 = vunpack.c.h.b16 %v723
        %v905 = vunpack.c.l.b16 %v724
        %v906 = vunpack.c.h.b16 %v724
        %v907 = vunpack.c.l.b16 %v725
        %v908 = vunpack.c.h.b16 %v725
        %v909 = vunpack.c.l.b16 %v726
        %v910 = vunpack.c.h.b16 %v726
        %v911 = vunpack.c.l.b16 %v727
        %v912 = vunpack.c.h.b16 %v727
        %v913 = vunpack.c.l.b16 %v728
        %v914 = vunpack.c.h.b16 %v728
        %v915 = vunpack.c.l.b16 %v729
        %v916 = vunpack.c.h.b16 %v729
        %v917 = vunpack.c.l.b16 %v730
        %v918 = vunpack.c.h.b16 %v730
        %v919 = vunpack.c.l.b16 %v731
        %v920 = vunpack.c.h.b16 %v731
        %v921 = vunpack.c.l.b16 %v732
        %v922 = vunpack.c.h.b16 %v732
        %v923 = vunpack.c.l.b16 %v733
        %v924 = vunpack.c.h.b16 %v733
        %v925 = vunpack.c.l.b16 %v734
        %v926 = vunpack.c.h.b16 %v734
        %v927 = vunpack.c.l.b16 %v735
        %v928 = vunpack.c.h.b16 %v735
        %v929 = vunpack.c.l.b16 %v736
        %v930 = vunpack.c.h.b16 %v736
        %v931 = vunpack.c.l.b16 %v737
        %v932 = vunpack.c.h.b16 %v737
        %v933 = vunpack.c.l.b16 %v738
        %v934 = vunpack.c.h.b16 %v738
        %v935 = vunpack.c.l.b16 %v739
        %v936 = vunpack.c.h.b16 %v739
        %v937 = vunpack.c.l.b16 %v740
        %v938 = vunpack.c.h.b16 %v740
        %v939 = vunpack.c.l.b16 %v741
        %v940 = vunpack.c.h.b16 %v741
        %v941 = vunpack.c.l.b16 %v742
        %v942 = vunpack.c.h.b16 %v742
        %v943 = vunpack.c.l.b16 %v743
        %v944 = vunpack.c.h.b16 %v743
        %v945 = vunpack.c.l.b16 %v744
        %v946 = vunpack.c.h.b16 %v744
        %v947 = vunpack.c.l.b16 %v745
        %v948 = vunpack.c.h.b16 %v745
        %v949 = vunpack.c.l.b16 %v746
        %v950 = vunpack.c.h.b16 %v746
        %v951 = vunpack.c.l.b16 %v747
        %v952 = vunpack.c.h.b16 %v747
        %v953 = vunpack.c.l.b16 %v748
        %v954 = vunpack.c.h.b16 %v748
        %v955 = vunpack.c.l.b16 %v749
        %v956 = vunpack.c.h.b16 %v749
        %v957 = vunpack.c.l.b16 %v750
        %v958 = vunpack.c.h.b16 %v750
        %v959 = vunpack.c.l.b16 %v751
        %v960 = vunpack.c.h.b16 %v751
        %v961 = vunpack.c.l.b16 %v752
        %v962 = vunpack.c.h.b16 %v752
        %v963 = vunpack.c.l.b16 %v753
        %v964 = vunpack.c.h.b16 %v753
        %v965 = vunpack.c.l.b16 %v754
        %v966 = vunpack.c.h.b16 %v754
        %v967 = vunpack.c.l.b16 %v755
        %v968 = vunpack.c.h.b16 %v755
        %v969 = vunpack.c.l.b16 %v756
        %v970 = vunpack.c.h.b16 %v756
        %v971 = vunpack.c.l.b16 %v757
        %v972 = vunpack.c.h.b16 %v757
        %v973 = vunpack.c.l.b16 %v758
        %v974 = vunpack.c.h.b16 %v758
        %v975 = vunpack.c.l.b16 %v759
        %v976 = vunpack.c.h.b16 %v759
        %v977 = vunpack.c.l.b16 %v760
        %v978 = vunpack.c.h.b16 %v760
        %v979 = vunpack.c.l.b16 %v761
        %v980 = vunpack.c.h.b16 %v761
        %v981 = vunpack.c.l.b16 %v762
        %v982 = vunpack.c.h.b16 %v762
        %v983 = vunpack.c.l.b16 %v763
        %v984 = vunpack.c.h.b16 %v763
        %v985 = vpack.c.b16 %v861, %v857
        %v986 = vpack.c.b16 %v862, %v858
        %v987 = vpack.c.b16 %v863, %v859
        %v988 = vpack.c.b16 %v864, %v860
        %v989 = vpack.c.b16 %v869, %v865
        %v990 = vpack.c.b16 %v870, %v866
        %v991 = vpack.c.b16 %v871, %v867
        %v992 = vpack.c.b16 %v872, %v868
        %v993 = vpack.c.b16 %v877, %v873
        %v994 = vpack.c.b16 %v878, %v874
        %v995 = vpack.c.b16 %v879, %v875
        %v996 = vpack.c.b16 %v880, %v876
        %v997 = vpack.c.b16 %v885, %v881
        %v998 = vpack.c.b16 %v886, %v882
        %v999 = vpack.c.b16 %v887, %v883
        %v1000 = vpack.c.b16 %v888, %v884
        %v1001 = vpack.c.b16 %v893, %v889
        %v1002 = vpack.c.b16 %v894, %v890
        %v1003 = vpack.c.b16 %v895, %v891
        %v1004 = vpack.c.b16 %v896, %v892
        %v1005 = vpack.c.b16 %v901, %v897
        %v1006 = vpack.c.b16 %v902, %v898
        %v1007 = vpack.c.b16 %v903, %v899
        %v1008 = vpack.c.b16 %v904, %v900
        %v1009 = vpack.c.b16 %v909, %v905
        %v1010 = vpack.c.b16 %v910, %v906
        %v1011 = vpack.c.b16 %v911, %v907
        %v1012 = vpack.c.b16 %v912, %v908
        %v1013 = vpack.c.b16 %v917, %v913
        %v1014 = vpack.c.b16 %v918, %v914
        %v1015 = vpack.c.b16 %v919, %v915
        %v1016 = vpack.c.b16 %v920, %v916
        %v1017 = vpack.c.b16 %v925, %v921
        %v1018 = vpack.c.b16 %v926, %v922
        %v1019 = vpack.c.b16 %v927, %v923
        %v1020 = vpack.c.b16 %v928, %v924
        %v1021 = vpack.c.b16 %v933, %v929
        %v1022 = vpack.c.b16 %v934, %v930
        %v1023 = vpack.c.b16 %v935, %v931
        %v1024 = vpack.c.b16 %v936, %v932
        %v1025 = vpack.c.b16 %v941, %v937
        %v1026 = vpack.c.b16 %v942, %v938
        %v1027 = vpack.c.b16 %v943, %v939
        %v1028 = vpack.c.b16 %v944, %v940
        %v1029 = vpack.c.b16 %v949, %v945
        %v1030 = vpack.c.b16 %v950, %v946
        %v1031 = vpack.c.b16 %v951, %v947
        %v1032 = vpack.c.b16 %v952, %v948
        %v1033 = vpack.c.b16 %v957, %v953
        %v1034 = vpack.c.b16 %v958, %v954
        %v1035 = vpack.c.b16 %v959, %v955
        %v1036 = vpack.c.b16 %v960, %v956
        %v1037 = vpack.c.b16 %v965, %v961
        %v1038 = vpack.c.b16 %v966, %v962
        %v1039 = vpack.c.b16 %v967, %v963
        %v1040 = vpack.c.b16 %v968, %v964
        %v1041 = vpack.c.b16 %v973, %v969
        %v1042 = vpack.c.b16 %v974, %v970
        %v1043 = vpack.c.b16 %v975, %v971
        %v1044 = vpack.c.b16 %v976, %v972
        %v1045 = vpack.c.b16 %v981, %v977
        %v1046 = vpack.c.b16 %v982, %v978
        %v1047 = vpack.c.b16 %v983, %v979
        %v1048 = vpack.c.b16 %v984, %v980
        %1113 = vmatprep.subr.bf16.mxu0 %v986
        %1114 = vmatpush1.bf16.msra.mxu0 %v985
        %1115 = vmatprep.subr.bf16.mxu0 %v990
        %1116 = vmatpush1.bf16.msra.mxu0 %v989
        %1117 = vmatprep.subr.bf16.mxu0 %v994
        %1118 = vmatpush1.bf16.msra.mxu0 %v993
        %1119 = vmatprep.subr.bf16.mxu0 %v998
        %1120 = vmatpush1.bf16.msra.mxu0 %v997
        %1121 = vmatprep.subr.bf16.mxu0 %v1002
        %1122 = vmatpush1.bf16.msra.mxu0 %v1001
        %1123 = vmatprep.subr.bf16.mxu0 %v1006
        %1124 = vmatpush1.bf16.msra.mxu0 %v1005
        %1125 = vmatprep.subr.bf16.mxu0 %v1010
        %1126 = vmatpush1.bf16.msra.mxu0 %v1009
        %1127 = vmatprep.subr.bf16.mxu0 %v1014
        %1128 = vmatpush1.bf16.msra.mxu0 %v1013
        %1129 = vmatprep.subr.bf16.mxu0 %v1018
        %1130 = vmatpush1.bf16.msra.mxu0 %v1017
        %1131 = vmatprep.subr.bf16.mxu0 %v1022
        %1132 = vmatpush1.bf16.msra.mxu0 %v1021
        %1133 = vmatprep.subr.bf16.mxu0 %v1026
        %1134 = vmatpush1.bf16.msra.mxu0 %v1025
        %1135 = vmatprep.subr.bf16.mxu0 %v1030
        %1136 = vmatpush1.bf16.msra.mxu0 %v1029
        %1137 = vmatprep.subr.bf16.mxu0 %v1034
        %1138 = vmatpush1.bf16.msra.mxu0 %v1033
        %1139 = vmatprep.subr.bf16.mxu0 %v1038
        %1140 = vmatpush1.bf16.msra.mxu0 %v1037
        %1141 = vmatprep.subr.bf16.mxu0 %v1042
        %1142 = vmatpush1.bf16.msra.mxu0 %v1041
        %1143 = vmatprep.subr.bf16.mxu0 %v1046
        %1144 = vmatpush1.bf16.msra.mxu0 %v1045
        %1145 = vmatprep.mubr.bf16.mxu0 %v790
        %1146 = vmatmul.mubr.bf16.gmra.mrb[0].mxu0 %v789
        %v1147 = vpop.f32.mrb[0].mxu0
        %v1148 = vadd.f32 %v769, %v1147
        %v1149 = vpop.f32.mrb[0].mxu0
        %v1150 = vadd.f32 %v773, %v1149
        %v1151 = vpop.f32.mrb[0].mxu0
        %v1152 = vpop.f32.mrb[0].mxu0
        %1153 = vdwg.mxu0
        %1154 = vmatprep.subr.bf16.mxu0 %v988
        %1155 = vmatpush1.bf16.msra.mxu0 %v987
        %1156 = vmatprep.subr.bf16.mxu0 %v992
        %1157 = vmatpush1.bf16.msra.mxu0 %v991
        %1158 = vmatprep.subr.bf16.mxu0 %v996
        %1159 = vmatpush1.bf16.msra.mxu0 %v995
        %1160 = vmatprep.subr.bf16.mxu0 %v1000
        %1161 = vmatpush1.bf16.msra.mxu0 %v999
        %1162 = vmatprep.subr.bf16.mxu0 %v1004
        %1163 = vmatpush1.bf16.msra.mxu0 %v1003
        %1164 = vmatprep.subr.bf16.mxu0 %v1008
        %1165 = vmatpush1.bf16.msra.mxu0 %v1007
        %1166 = vmatprep.subr.bf16.mxu0 %v1012
        %1167 = vmatpush1.bf16.msra.mxu0 %v1011
        %1168 = vmatprep.subr.bf16.mxu0 %v1016
        %1169 = vmatpush1.bf16.msra.mxu0 %v1015
        %1170 = vmatprep.subr.bf16.mxu0 %v1020
        %1171 = vmatpush1.bf16.msra.mxu0 %v1019
        %1172 = vmatprep.subr.bf16.mxu0 %v1024
        %1173 = vmatpush1.bf16.msra.mxu0 %v1023
        %1174 = vmatprep.subr.bf16.mxu0 %v1028
        %1175 = vmatpush1.bf16.msra.mxu0 %v1027
        %1176 = vmatprep.subr.bf16.mxu0 %v1032
        %1177 = vmatpush1.bf16.msra.mxu0 %v1031
        %1178 = vmatprep.subr.bf16.mxu0 %v1036
        %1179 = vmatpush1.bf16.msra.mxu0 %v1035
        %1180 = vmatprep.subr.bf16.mxu0 %v1040
        %1181 = vmatpush1.bf16.msra.mxu0 %v1039
        %1182 = vmatprep.subr.bf16.mxu0 %v1044
        %1183 = vmatpush1.bf16.msra.mxu0 %v1043
        %1184 = vmatprep.subr.bf16.mxu0 %v1048
        %1185 = vmatpush1.bf16.msra.mxu0 %v1047
        %1186 = vmatprep.mubr.bf16.mxu0 %v790
        %1187 = vmatmul.mubr.bf16.gmra.mrb[0].mxu0 %v789
        %v1188 = vpop.f32.mrb[0].mxu0
        %v1189 = vadd.f32 %v777, %v1188
        %v1190 = vpop.f32.mrb[0].mxu0
        %v1191 = vadd.f32 %v781, %v1190
        %v1192 = vpop.f32.mrb[0].mxu0
        %v1193 = vpop.f32.mrb[0].mxu0
        %1194 = vdwg.mxu0
        %1196 = vrot.lane.b32.xlu0 %v694, 96
        %v1197 = vpop.permute.xlu0 %1196
        %1199 = vrot.lane.b32.xlu0 %v694, 64
        %v1200 = vpop.permute.xlu0 %1199
        %1202 = vrot.lane.b32.xlu0 %v694, 32
        %v1203 = vpop.permute.xlu0 %1202
        %1206 = vrot.lane.b32.xlu0 %v696, 96
        %v1207 = vpop.permute.xlu0 %1206
        %1209 = vrot.lane.b32.xlu0 %v696, 64
        %v1210 = vpop.permute.xlu0 %1209
        %1212 = vrot.lane.b32.xlu0 %v696, 32
        %v1213 = vpop.permute.xlu0 %1212
        %v1215 = vpack.c.bf16 %v1197, %v694
        %v1216 = vpack.c.bf16 %v1203, %v1200
        %v1217 = vpack.c.bf16 %v1207, %v696
        %v1218 = vpack.c.bf16 %v1213, %v1210
        %1220 = vrot.lane.b32.xlu0 %v1148, 96
        %v1221 = vpop.permute.xlu0 %1220
        %1223 = vrot.lane.b32.xlu0 %v1148, 64
        %v1224 = vpop.permute.xlu0 %1223
        %1226 = vrot.lane.b32.xlu0 %v1148, 32
        %v1227 = vpop.permute.xlu0 %1226
        %1230 = vrot.lane.b32.xlu0 %v1150, 96
        %v1231 = vpop.permute.xlu0 %1230
        %1233 = vrot.lane.b32.xlu0 %v1150, 64
        %v1234 = vpop.permute.xlu0 %1233
        %1236 = vrot.lane.b32.xlu0 %v1150, 32
        %v1237 = vpop.permute.xlu0 %1236
        %v1239 = vpack.c.bf16 %v1221, %v1148
        %v1240 = vpack.c.bf16 %v1227, %v1224
        %v1241 = vpack.c.bf16 %v1231, %v1150
        %v1242 = vpack.c.bf16 %v1237, %v1234
        %1244 = vrot.lane.b32.xlu0 %v1189, 96
        %v1245 = vpop.permute.xlu0 %1244
        %1247 = vrot.lane.b32.xlu0 %v1189, 64
        %v1248 = vpop.permute.xlu0 %1247
        %1250 = vrot.lane.b32.xlu0 %v1189, 32
        %v1251 = vpop.permute.xlu0 %1250
        %1254 = vrot.lane.b32.xlu0 %v1191, 96
        %v1255 = vpop.permute.xlu0 %1254
        %1257 = vrot.lane.b32.xlu0 %v1191, 64
        %v1258 = vpop.permute.xlu0 %1257
        %1260 = vrot.lane.b32.xlu0 %v1191, 32
        %v1261 = vpop.permute.xlu0 %1260
        %v1263 = vpack.c.bf16 %v1245, %v1189
        %v1264 = vpack.c.bf16 %v1251, %v1248
        %v1265 = vpack.c.bf16 %v1255, %v1191
        %v1266 = vpack.c.bf16 %v1261, %v1258
        %v1267 = vld [vmem:[#allocation11] sm:$0xff]
        %v1268 = vld [vmem:[#allocation11 + $0x8] sm:$0xff]
        %v1269 = vld [vmem:[#allocation11 + $0x10] sm:$0xff]
        %v1270 = vld [vmem:[#allocation11 + $0x18] sm:$0xff]
        %v1271 = vld [vmem:[#allocation11 + $0x20] sm:$0xff]
        %v1272 = vld [vmem:[#allocation11 + $0x28] sm:$0xff]
        %v1273 = vld [vmem:[#allocation11 + $0x30] sm:$0xff]
        %v1274 = vld [vmem:[#allocation11 + $0x38] sm:$0xff]
        %vm1275 = vcmask 261120
        %v1277 = vsel %vm1275, %v1215, 0
        %v1280 = vsel %vm1275, %v1216, 0
        %v1283 = vsel %vm1275, %v1217, 0
        %v1286 = vsel %vm1275, %v1218, 0
        %v1289 = vsel %vm1275, %v1239, 0
        %v1292 = vsel %vm1275, %v1240, 0
        %v1295 = vsel %vm1275, %v1241, 0
        %v1298 = vsel %vm1275, %v1242, 0
        %1300 = vmatprep.subr.bf16.mxu0 0
        %1301 = vmatpush1.bf16.xpose.msra.mxu0 %v1289
        %1302 = vmatprep.subr.bf16.mxu0 0
        %1303 = vmatpush1.bf16.xpose.msra.mxu0 %v1292
        %1304 = vmatprep.subr.bf16.mxu0 0
        %1305 = vmatpush1.bf16.xpose.msra.mxu0 %v1295
        %1306 = vmatprep.subr.bf16.mxu0 0
        %1307 = vmatpush1.bf16.xpose.msra.mxu0 %v1298
        %1308 = vmatprep.subr.bf16.mxu0 0
        %1309 = vmatpush1.bf16.xpose.msra.mxu0 0
        %1310 = vmatprep.subr.bf16.mxu0 0
        %1311 = vmatpush1.bf16.xpose.msra.mxu0 0
        %1312 = vmatprep.subr.bf16.mxu0 0
        %1313 = vmatpush1.bf16.xpose.msra.mxu0 0
        %1314 = vmatprep.subr.bf16.mxu0 0
        %1315 = vmatpush1.bf16.xpose.msra.mxu0 0
        %1316 = vmatprep.subr.bf16.mxu0 0
        %1317 = vmatpush1.bf16.xpose.msra.mxu0 0
        %1318 = vmatprep.subr.bf16.mxu0 0
        %1319 = vmatpush1.bf16.xpose.msra.mxu0 0
        %1320 = vmatprep.subr.bf16.mxu0 0
        %1321 = vmatpush1.bf16.xpose.msra.mxu0 0
        %1322 = vmatprep.subr.bf16.mxu0 0
        %1323 = vmatpush1.bf16.xpose.msra.mxu0 0
        %1324 = vmatprep.subr.bf16.mxu0 0
        %1325 = vmatpush1.bf16.xpose.msra.mxu0 0
        %1326 = vmatprep.subr.bf16.mxu0 0
        %1327 = vmatpush1.bf16.xpose.msra.mxu0 0
        %1328 = vmatprep.subr.bf16.mxu0 0
        %1329 = vmatpush1.bf16.xpose.msra.mxu0 0
        %1330 = vmatprep.subr.bf16.mxu0 0
        %1331 = vmatpush1.bf16.xpose.msra.mxu0 0
        %1332 = vmatprep.mubr.bf16.mxu0 0
        %1333 = vmatmul.mubr.bf16.gmra.mrb[0].mxu0 %v1277
        %v1334 = vpop.f32.mrb[0].mxu0
        %v1335 = vadd.f32 %v1267, %v1334
        %v1336 = vpop.f32.mrb[0].mxu0
        %v1337 = vpop.f32.mrb[0].mxu0
        %v1338 = vadd.f32 %v1268, %v1337
        %v1339 = vpop.f32.mrb[0].mxu0
        %1340 = vmatprep.mubr.bf16.mxu0 0
        %1341 = vmatmul.mubr.bf16.gmra.mrb[0].mxu0 %v1280
        %v1342 = vpop.f32.mrb[0].mxu0
        %v1343 = vadd.f32 %v1269, %v1342
        %v1344 = vpop.f32.mrb[0].mxu0
        %v1345 = vpop.f32.mrb[0].mxu0
        %v1346 = vadd.f32 %v1270, %v1345
        %v1347 = vpop.f32.mrb[0].mxu0
        %1348 = vmatprep.mubr.bf16.mxu0 0
        %1349 = vmatmul.mubr.bf16.gmra.mrb[0].mxu0 %v1283
        %v1350 = vpop.f32.mrb[0].mxu0
        %v1351 = vadd.f32 %v1271, %v1350
        %v1352 = vpop.f32.mrb[0].mxu0
        %v1353 = vpop.f32.mrb[0].mxu0
        %v1354 = vadd.f32 %v1272, %v1353
        %v1355 = vpop.f32.mrb[0].mxu0
        %1356 = vmatprep.mubr.bf16.mxu0 0
        %1357 = vmatmul.mubr.bf16.gmra.mrb[0].mxu0 %v1286
        %v1358 = vpop.f32.mrb[0].mxu0
        %v1359 = vadd.f32 %v1273, %v1358
        %v1360 = vpop.f32.mrb[0].mxu0
        %v1361 = vpop.f32.mrb[0].mxu0
        %v1362 = vadd.f32 %v1274, %v1361
        %v1363 = vpop.f32.mrb[0].mxu0
        %1364 = vdwg.mxu0
        %vm1365 = vcmask 523264
        %v1366 = vsel %vm1365, %v1335, -inf
        %1367 = vmax.xlane.f32.xlu0 %v1366
        %v1368 = vpop.xlane.xlu0 %1367
        %v1369 = vsel %vm1365, %v1338, -inf
        %1370 = vmax.xlane.f32.xlu0 %v1369
        %v1371 = vpop.xlane.xlu0 %1370
        %v1372 = vsel %vm1365, %v1343, -inf
        %1373 = vmax.xlane.f32.xlu0 %v1372
        %v1374 = vpop.xlane.xlu0 %1373
        %v1375 = vsel %vm1365, %v1346, -inf
        %1376 = vmax.xlane.f32.xlu0 %v1375
        %v1377 = vpop.xlane.xlu0 %1376
        %v1378 = vsel %vm1365, %v1351, -inf
        %1379 = vmax.xlane.f32.xlu0 %v1378
        %v1380 = vpop.xlane.xlu0 %1379
        %v1381 = vsel %vm1365, %v1354, -inf
        %1382 = vmax.xlane.f32.xlu0 %v1381
        %v1383 = vpop.xlane.xlu0 %1382
        %v1384 = vsel %vm1365, %v1359, -inf
        %1385 = vmax.xlane.f32.xlu0 %v1384
        %v1386 = vpop.xlane.xlu0 %1385
        %v1387 = vsel %vm1365, %v1362, -inf
        %1388 = vmax.xlane.f32.xlu0 %v1387
        %v1389 = vpop.xlane.xlu0 %1388
        %v1390 = vsub.f32 %v1335, %v1368
        %v1391 = vsub.f32 %v1338, %v1371
        %v1392 = vsub.f32 %v1343, %v1374
        %v1393 = vsub.f32 %v1346, %v1377
        %v1394 = vsub.f32 %v1351, %v1380
        %v1395 = vsub.f32 %v1354, %v1383
        %v1396 = vsub.f32 %v1359, %v1386
        %v1397 = vsub.f32 %v1362, %v1389
        %v1398 = vmul.f32 %v1390, 1.442695
        %v1399 = vpow.pop %v1398
        %v1400 = vmul.f32 %v1391, 1.442695
        %v1401 = vpow.pop %v1400
        %v1402 = vmul.f32 %v1392, 1.442695
        %v1403 = vpow.pop %v1402
        %v1404 = vmul.f32 %v1393, 1.442695
        %v1405 = vpow.pop %v1404
        %v1406 = vmul.f32 %v1394, 1.442695
        %v1407 = vpow.pop %v1406
        %v1408 = vmul.f32 %v1395, 1.442695
        %v1409 = vpow.pop %v1408
        %v1410 = vmul.f32 %v1396, 1.442695
        %v1411 = vpow.pop %v1410
        %v1412 = vmul.f32 %v1397, 1.442695
        %v1413 = vpow.pop %v1412
        %v1414 = vsel %vm1365, %v1399, 0.0
        %1415 = vadd.xlane.f32.xlu0 %v1414
        %v1416 = vpop.xlane.xlu0 %1415
        %v1417 = vsel %vm1365, %v1401, 0.0
        %1418 = vadd.xlane.f32.xlu0 %v1417
        %v1419 = vpop.xlane.xlu0 %1418
        %v1420 = vsel %vm1365, %v1403, 0.0
        %1421 = vadd.xlane.f32.xlu0 %v1420
        %v1422 = vpop.xlane.xlu0 %1421
        %v1423 = vsel %vm1365, %v1405, 0.0
        %1424 = vadd.xlane.f32.xlu0 %v1423
        %v1425 = vpop.xlane.xlu0 %1424
        %v1426 = vsel %vm1365, %v1407, 0.0
        %1427 = vadd.xlane.f32.xlu0 %v1426
        %v1428 = vpop.xlane.xlu0 %1427
        %v1429 = vsel %vm1365, %v1409, 0.0
        %1430 = vadd.xlane.f32.xlu0 %v1429
        %v1431 = vpop.xlane.xlu0 %1430
        %v1432 = vsel %vm1365, %v1411, 0.0
        %1433 = vadd.xlane.f32.xlu0 %v1432
        %v1434 = vpop.xlane.xlu0 %1433
        %v1435 = vsel %vm1365, %v1413, 0.0
        %1436 = vadd.xlane.f32.xlu0 %v1435
        %v1437 = vpop.xlane.xlu0 %1436
        %v1438 = vrcp.pop %v1416
        %v1439 = vmul.f32 %v1399, %v1438
        %v1440 = vrcp.pop %v1419
        %v1441 = vmul.f32 %v1401, %v1440
        %v1442 = vrcp.pop %v1422
        %v1443 = vmul.f32 %v1403, %v1442
        %v1444 = vrcp.pop %v1425
        %v1445 = vmul.f32 %v1405, %v1444
        %v1446 = vrcp.pop %v1428
        %v1447 = vmul.f32 %v1407, %v1446
        %v1448 = vrcp.pop %v1431
        %v1449 = vmul.f32 %v1409, %v1448
        %v1450 = vrcp.pop %v1434
        %v1451 = vmul.f32 %v1411, %v1450
        %v1452 = vrcp.pop %v1437
        %v1453 = vmul.f32 %v1413, %v1452
        %v1454 = vpack.c.bf16 %v1441, %v1439
        %v1455 = vpack.c.bf16 %v1445, %v1443
        %v1456 = vpack.c.bf16 %v1449, %v1447
        %v1457 = vpack.c.bf16 %v1453, %v1451
        %v1459 = vsel %vm1365, %v1454, 0
        %v1462 = vsel %vm1365, %v1455, 0
        %v1465 = vsel %vm1365, %v1456, 0
        %v1468 = vsel %vm1365, %v1457, 0
        %1470 = vmatprep.subr.bf16.mxu0 0
        %1471 = vmatpush1.bf16.msra.mxu0 %v1263
        %1472 = vmatprep.subr.bf16.mxu0 0
        %1473 = vmatpush1.bf16.msra.mxu0 %v1264
        %1474 = vmatprep.subr.bf16.mxu0 0
        %1475 = vmatpush1.bf16.msra.mxu0 %v1265
        %1476 = vmatprep.subr.bf16.mxu0 0
        %1477 = vmatpush1.bf16.msra.mxu0 %v1266
        %1478 = vmatprep.subr.bf16.mxu0 0
        %1479 = vmatpush1.bf16.msra.mxu0 0
        %1480 = vmatprep.subr.bf16.mxu0 0
        %1481 = vmatpush1.bf16.msra.mxu0 0
        %1482 = vmatprep.subr.bf16.mxu0 0
        %1483 = vmatpush1.bf16.msra.mxu0 0
        %1484 = vmatprep.subr.bf16.mxu0 0
        %1485 = vmatpush1.bf16.msra.mxu0 0
        %1486 = vmatprep.subr.bf16.mxu0 0
        %1487 = vmatpush1.bf16.msra.mxu0 0
        %1488 = vmatprep.subr.bf16.mxu0 0
        %1489 = vmatpush1.bf16.msra.mxu0 0
        %1490 = vmatprep.subr.bf16.mxu0 0
        %1491 = vmatpush1.bf16.msra.mxu0 0
        %1492 = vmatprep.subr.bf16.mxu0 0
        %1493 = vmatpush1.bf16.msra.mxu0 0
        %1494 = vmatprep.subr.bf16.mxu0 0
        %1495 = vmatpush1.bf16.msra.mxu0 0
        %1496 = vmatprep.subr.bf16.mxu0 0
        %1497 = vmatpush1.bf16.msra.mxu0 0
        %1498 = vmatprep.subr.bf16.mxu0 0
        %1499 = vmatpush1.bf16.msra.mxu0 0
        %1500 = vmatprep.subr.bf16.mxu0 0
        %1501 = vmatpush1.bf16.msra.mxu0 0
        %1502 = vmatprep.mubr.bf16.mxu0 0
        %1503 = vmatmul.mubr.bf16.gmra.mrb[0].mxu0 %v1459
        %v1504 = vpop.f32.mrb[0].mxu0
        %v1505 = vadd.f32 0.0, %v1504
        %v1506 = vpop.f32.mrb[0].mxu0
        %v1507 = vpop.f32.mrb[0].mxu0
        %v1508 = vadd.f32 0.0, %v1507
        %v1509 = vpop.f32.mrb[0].mxu0
        %1510 = vmatprep.mubr.bf16.mxu0 0
        %1511 = vmatmul.mubr.bf16.gmra.mrb[0].mxu0 %v1462
        %v1512 = vpop.f32.mrb[0].mxu0
        %v1513 = vadd.f32 0.0, %v1512
        %v1514 = vpop.f32.mrb[0].mxu0
        %v1515 = vpop.f32.mrb[0].mxu0
        %v1516 = vadd.f32 0.0, %v1515
        %v1517 = vpop.f32.mrb[0].mxu0
        %1518 = vmatprep.mubr.bf16.mxu0 0
        %1519 = vmatmul.mubr.bf16.gmra.mrb[0].mxu0 %v1465
        %v1520 = vpop.f32.mrb[0].mxu0
        %v1521 = vadd.f32 0.0, %v1520
        %v1522 = vpop.f32.mrb[0].mxu0
        %v1523 = vpop.f32.mrb[0].mxu0
        %v1524 = vadd.f32 0.0, %v1523
        %v1525 = vpop.f32.mrb[0].mxu0
        %1526 = vmatprep.mubr.bf16.mxu0 0
        %1527 = vmatmul.mubr.bf16.gmra.mrb[0].mxu0 %v1468
        %v1528 = vpop.f32.mrb[0].mxu0
        %v1529 = vadd.f32 0.0, %v1528
        %v1530 = vpop.f32.mrb[0].mxu0
        %v1531 = vpop.f32.mrb[0].mxu0
        %v1532 = vadd.f32 0.0, %v1531
        %v1533 = vpop.f32.mrb[0].mxu0
        %1534 = vdwg.mxu0
        %1536 = vrot.lane.b32.xlu0 %v1508, 32
        %v1537 = vpop.permute.xlu0 %1536
        %1540 = vrot.lane.b32.xlu0 %v1513, 64
        %v1541 = vpop.permute.xlu0 %1540
        %1544 = vrot.lane.b32.xlu0 %v1516, 96
        %v1545 = vpop.permute.xlu0 %1544
        %1548 = vrot.lane.b32.xlu0 %v1524, 32
        %v1549 = vpop.permute.xlu0 %1548
        %1552 = vrot.lane.b32.xlu0 %v1529, 64
        %v1553 = vpop.permute.xlu0 %1552
        %1556 = vrot.lane.b32.xlu0 %v1532, 96
        %v1557 = vpop.permute.xlu0 %1556
        %v1559 = vsel %vm1275, %v1505, %v1537
        %v1560 = vsel %vm1365, %v1559, %v1541
        %vm1561 = vcmask 785408
        %v1562 = vsel %vm1561, %v1560, %v1545
        %v1563 = vsel %vm1275, %v1521, %v1549
        %v1564 = vsel %vm1365, %v1563, %v1553
        %v1565 = vsel %vm1561, %v1564, %v1557
        %v1566 = vpack.c.bf16 %v1562, %v1562
        %v1567 = vpack.c.bf16 %v1565, %v1565
        %v1568 = vld [vmem:[#allocation10] sm:$0xff]
        %v1569 = vld [vmem:[#allocation10 + $0x8] sm:$0xff]
        %v1570 = vld [vmem:[#allocation10 + $0x10] sm:$0xff]
        %v1571 = vld [vmem:[#allocation10 + $0x18] sm:$0xff]
        %v1572 = vld [vmem:[#allocation10 + $0x20] sm:$0xff]
        %v1573 = vld [vmem:[#allocation10 + $0x28] sm:$0xff]
        %v1574 = vld [vmem:[#allocation10 + $0x30] sm:$0xff]
        %v1575 = vld [vmem:[#allocation10 + $0x38] sm:$0xff]
        %v1576 = vld [vmem:[#allocation10 + $0x40] sm:$0xff]
        %v1577 = vld [vmem:[#allocation10 + $0x48] sm:$0xff]
        %v1578 = vld [vmem:[#allocation10 + $0x50] sm:$0xff]
        %v1579 = vld [vmem:[#allocation10 + $0x58] sm:$0xff]
        %v1580 = vld [vmem:[#allocation10 + $0x60] sm:$0xff]
        %v1581 = vld [vmem:[#allocation10 + $0x68] sm:$0xff]
        %v1582 = vld [vmem:[#allocation10 + $0x70] sm:$0xff]
        %v1583 = vld [vmem:[#allocation10 + $0x78] sm:$0xff]
        %v1584 = vld [vmem:[#allocation10 + $0x80] sm:$0xff]
        %v1585 = vld [vmem:[#allocation10 + $0x88] sm:$0xff]
        %v1586 = vld [vmem:[#allocation10 + $0x90] sm:$0xff]
        %v1587 = vld [vmem:[#allocation10 + $0x98] sm:$0xff]
        %v1588 = vld [vmem:[#allocation10 + $0xa0] sm:$0xff]
        %v1589 = vld [vmem:[#allocation10 + $0xa8] sm:$0xff]
        %v1590 = vld [vmem:[#allocation10 + $0xb0] sm:$0xff]
        %v1591 = vld [vmem:[#allocation10 + $0xb8] sm:$0xff]
        %v1592 = vld [vmem:[#allocation10 + $0xc0] sm:$0xff]
        %v1593 = vld [vmem:[#allocation10 + $0xc8] sm:$0xff]
        %v1594 = vld [vmem:[#allocation10 + $0xd0] sm:$0xff]
        %v1595 = vld [vmem:[#allocation10 + $0xd8] sm:$0xff]
        %v1596 = vld [vmem:[#allocation10 + $0xe0] sm:$0xff]
        %v1597 = vld [vmem:[#allocation10 + $0xe8] sm:$0xff]
        %v1598 = vld [vmem:[#allocation10 + $0xf0] sm:$0xff]
        %v1599 = vld [vmem:[#allocation10 + $0xf8] sm:$0xff]
        %v1600 = vld [vmem:[%s7] sm:$0x3]
        %v1602 = vlaneseq
        %v1603 = vshrl.u32 %v1602, 7
        %v1604 = vsub.s32 0, %v1603
        %v1605 = vrot.slane %v1600, %v1604
        %v1606 = vlaneseq
        %v1607 = vshrl.u32 %v1606, 7
        %v1608 = vsub.s32 1, %v1607
        %v1609 = vrot.slane %v1600, %v1608
        %v1644 = vunpack.c.l.b16 %v1568
        %v1645 = vunpack.c.h.b16 %v1568
        %v1646 = vunpack.c.l.b16 %v1569
        %v1647 = vunpack.c.h.b16 %v1569
        %v1648 = vunpack.c.l.b16 %v1570
        %v1649 = vunpack.c.h.b16 %v1570
        %v1650 = vunpack.c.l.b16 %v1571
        %v1651 = vunpack.c.h.b16 %v1571
        %v1652 = vunpack.c.l.b16 %v1572
        %v1653 = vunpack.c.h.b16 %v1572
        %v1654 = vunpack.c.l.b16 %v1573
        %v1655 = vunpack.c.h.b16 %v1573
        %v1656 = vunpack.c.l.b16 %v1574
        %v1657 = vunpack.c.h.b16 %v1574
        %v1658 = vunpack.c.l.b16 %v1575
        %v1659 = vunpack.c.h.b16 %v1575
        %v1660 = vunpack.c.l.b16 %v1576
        %v1661 = vunpack.c.h.b16 %v1576
        %v1662 = vunpack.c.l.b16 %v1577
        %v1663 = vunpack.c.h.b16 %v1577
        %v1664 = vunpack.c.l.b16 %v1578
        %v1665 = vunpack.c.h.b16 %v1578
        %v1666 = vunpack.c.l.b16 %v1579
        %v1667 = vunpack.c.h.b16 %v1579
        %v1668 = vunpack.c.l.b16 %v1580
        %v1669 = vunpack.c.h.b16 %v1580
        %v1670 = vunpack.c.l.b16 %v1581
        %v1671 = vunpack.c.h.b16 %v1581
        %v1672 = vunpack.c.l.b16 %v1582
        %v1673 = vunpack.c.h.b16 %v1582
        %v1674 = vunpack.c.l.b16 %v1583
        %v1675 = vunpack.c.h.b16 %v1583
        %v1676 = vunpack.c.l.b16 %v1584
        %v1677 = vunpack.c.h.b16 %v1584
        %v1678 = vunpack.c.l.b16 %v1585
        %v1679 = vunpack.c.h.b16 %v1585
        %v1680 = vunpack.c.l.b16 %v1586
        %v1681 = vunpack.c.h.b16 %v1586
        %v1682 = vunpack.c.l.b16 %v1587
        %v1683 = vunpack.c.h.b16 %v1587
        %v1684 = vunpack.c.l.b16 %v1588
        %v1685 = vunpack.c.h.b16 %v1588
        %v1686 = vunpack.c.l.b16 %v1589
        %v1687 = vunpack.c.h.b16 %v1589
        %v1688 = vunpack.c.l.b16 %v1590
        %v1689 = vunpack.c.h.b16 %v1590
        %v1690 = vunpack.c.l.b16 %v1591
        %v1691 = vunpack.c.h.b16 %v1591
        %v1692 = vunpack.c.l.b16 %v1592
        %v1693 = vunpack.c.h.b16 %v1592
        %v1694 = vunpack.c.l.b16 %v1593
        %v1695 = vunpack.c.h.b16 %v1593
        %v1696 = vunpack.c.l.b16 %v1594
        %v1697 = vunpack.c.h.b16 %v1594
        %v1698 = vunpack.c.l.b16 %v1595
        %v1699 = vunpack.c.h.b16 %v1595
        %v1700 = vunpack.c.l.b16 %v1596
        %v1701 = vunpack.c.h.b16 %v1596
        %v1702 = vunpack.c.l.b16 %v1597
        %v1703 = vunpack.c.h.b16 %v1597
        %v1704 = vunpack.c.l.b16 %v1598
        %v1705 = vunpack.c.h.b16 %v1598
        %v1706 = vunpack.c.l.b16 %v1599
        %v1707 = vunpack.c.h.b16 %v1599
        %v1708 = vpack.c.b16 %v1646, %v1644
        %v1709 = vpack.c.b16 %v1647, %v1645
        %v1710 = vpack.c.b16 %v1650, %v1648
        %v1711 = vpack.c.b16 %v1651, %v1649
        %v1712 = vpack.c.b16 %v1654, %v1652
        %v1713 = vpack.c.b16 %v1655, %v1653
        %v1714 = vpack.c.b16 %v1658, %v1656
        %v1715 = vpack.c.b16 %v1659, %v1657
        %v1716 = vpack.c.b16 %v1662, %v1660
        %v1717 = vpack.c.b16 %v1663, %v1661
        %v1718 = vpack.c.b16 %v1666, %v1664
        %v1719 = vpack.c.b16 %v1667, %v1665
        %v1720 = vpack.c.b16 %v1670, %v1668
        %v1721 = vpack.c.b16 %v1671, %v1669
        %v1722 = vpack.c.b16 %v1674, %v1672
        %v1723 = vpack.c.b16 %v1675, %v1673
        %v1724 = vpack.c.b16 %v1678, %v1676
        %v1725 = vpack.c.b16 %v1679, %v1677
        %v1726 = vpack.c.b16 %v1682, %v1680
        %v1727 = vpack.c.b16 %v1683, %v1681
        %v1728 = vpack.c.b16 %v1686, %v1684
        %v1729 = vpack.c.b16 %v1687, %v1685
        %v1730 = vpack.c.b16 %v1690, %v1688
        %v1731 = vpack.c.b16 %v1691, %v1689
        %v1732 = vpack.c.b16 %v1694, %v1692
        %v1733 = vpack.c.b16 %v1695, %v1693
        %v1734 = vpack.c.b16 %v1698, %v1696
        %v1735 = vpack.c.b16 %v1699, %v1697
        %v1736 = vpack.c.b16 %v1702, %v1700
        %v1737 = vpack.c.b16 %v1703, %v1701
        %v1738 = vpack.c.b16 %v1706, %v1704
        %v1739 = vpack.c.b16 %v1707, %v1705
        %1772 = vmatprep.subr.bf16.mxu0 %v1709
        %1773 = vmatpush1.bf16.msra.mxu0 %v1708
        %1774 = vmatprep.subr.bf16.mxu0 %v1711
        %1775 = vmatpush1.bf16.msra.mxu0 %v1710
        %1776 = vmatprep.subr.bf16.mxu0 %v1713
        %1777 = vmatpush1.bf16.msra.mxu0 %v1712
        %1778 = vmatprep.subr.bf16.mxu0 %v1715
        %1779 = vmatpush1.bf16.msra.mxu0 %v1714
        %1780 = vmatprep.subr.bf16.mxu0 %v1717
        %1781 = vmatpush1.bf16.msra.mxu0 %v1716
        %1782 = vmatprep.subr.bf16.mxu0 %v1719
        %1783 = vmatpush1.bf16.msra.mxu0 %v1718
        %1784 = vmatprep.subr.bf16.mxu0 %v1721
        %1785 = vmatpush1.bf16.msra.mxu0 %v1720
        %1786 = vmatprep.subr.bf16.mxu0 %v1723
        %1787 = vmatpush1.bf16.msra.mxu0 %v1722
        %1788 = vmatprep.subr.bf16.mxu0 %v1725
        %1789 = vmatpush1.bf16.msra.mxu0 %v1724
        %1790 = vmatprep.subr.bf16.mxu0 %v1727
        %1791 = vmatpush1.bf16.msra.mxu0 %v1726
        %1792 = vmatprep.subr.bf16.mxu0 %v1729
        %1793 = vmatpush1.bf16.msra.mxu0 %v1728
        %1794 = vmatprep.subr.bf16.mxu0 %v1731
        %1795 = vmatpush1.bf16.msra.mxu0 %v1730
        %1796 = vmatprep.subr.bf16.mxu0 %v1733
        %1797 = vmatpush1.bf16.msra.mxu0 %v1732
        %1798 = vmatprep.subr.bf16.mxu0 %v1735
        %1799 = vmatpush1.bf16.msra.mxu0 %v1734
        %1800 = vmatprep.subr.bf16.mxu0 %v1737
        %1801 = vmatpush1.bf16.msra.mxu0 %v1736
        %1802 = vmatprep.subr.bf16.mxu0 %v1739
        %1803 = vmatpush1.bf16.msra.mxu0 %v1738
        %1804 = vmatprep.mubr.bf16.mxu0 %v1567
        %1805 = vmatmul.mubr.bf16.gmra.mrb[0].mxu0 %v1566
        %v1806 = vpop.f32.mrb[0].mxu0
        %v1807 = vadd.f32 %v1605, %v1806
        %v1808 = vpop.f32.mrb[0].mxu0
        %v1809 = vadd.f32 %v1609, %v1808
        %v1810 = vpop.f32.mrb[0].mxu0
        %v1811 = vpop.f32.mrb[0].mxu0
        %1812 = vdwg.mxu0
        %1813 = vst [vmem:[%s444] sm:$0xff] %v1807
        %1814 = vst [vmem:[%s444 + $0x8] sm:$0xff] %v1809
        %s1815 = sand.u32 %s238, 1
        %s1816 = scalar_lea.sflag [#allocation4], %s1815
        %s1817 = sand.u32 %s238, 1
        %s1818 = smul.addr %s1817, 16
        %s1819 = scalar_lea.vmem [#allocation13], %s1818
        // Predicated region
        $region81: #{tpu_custom_call.1} parent=55 // pred_check
          %p1820 = pneg %p248
        $region82: #{tpu_custom_call.1} parent=55 // pred_check_branch
          %1822 = sbr.rel (%p1820) target = $region84
        $region83: #{tpu_custom_call.1} parent=55 // pred_region
          %s1824 = ssub.s32 256, 256
          %1825 = vsyncadd %s1816, %s1824
          %s1826 = smul.addr %s31, 2
          %s1827 = smul.addr %s1826, 128
          %s1828 = scalar_lea.hbm %s9, %s1827
          %s1830 = sshll.u32 %s1819, 4
          %s1831 = int_to_ptr.vmem [resolvable:$true] %s1830
          %1833 = dma.vmem_to_hbm [thread:$0]  %s1831, 256, %s1828, %s1816
        $region84: #{tpu_custom_call.1} parent=55 // pred_fallthru
          _
      $region56: #{tpu_custom_call.1} parent=5 // pred_fallthru
        _
      %p1834 = scmp.le.s32.totalorder 2, %s26
      // Predicated region
      $region85: #{tpu_custom_call.1} parent=5 // pred_check
        %p1835 = pneg %p1834
      $region86: #{tpu_custom_call.1} parent=5 // pred_check_branch
        %1837 = sbr.rel (%p1835) target = $region88
      $region87: #{tpu_custom_call.1} parent=5 // pred_region
        %s1838 = ssub.s32 %s26, 2
        // Predicated region
        $region89: #{tpu_custom_call.1} parent=87 // pred_check
          %p1839 = pneg %p254
        $region90: #{tpu_custom_call.1} parent=87 // pred_check_branch
          %1841 = sbr.rel (%p1839) target = $region92
        $region91: #{tpu_custom_call.1} parent=87 // pred_region
          %s1842 = sand.u32 %s239, 1
          %s1843 = scalar_lea.sflag [#allocation4], %s1842
          %s1844 = sand.u32 %s239, 1
          %s1845 = smul.addr %s1844, 16
          %s1846 = scalar_lea.vmem [#allocation13], %s1845
          %1847 = dma.done %s1843, 256
        $region92: #{tpu_custom_call.1} parent=87 // pred_fallthru
          _
      $region88: #{tpu_custom_call.1} parent=5 // pred_fallthru
        _
    $region6: #{tpu_custom_call.1} parent=1 // loop_footer
      %s30 = sadd.s32 1, %s26
    $region7: #{tpu_custom_call.1} parent=1 // loop_footer_branch
      %25 = sbr.rel target = $region3
    $region8: #{tpu_custom_call.1} parent=1 // loop_exit
      _
    %1848 = vsyncpa [#allocation3], 1
    %s1849 = scalar_lea.sflag [#allocation3], 1
    %1850 = vsyncpa %s1849, 1
    %1851 = vsyncpa [#allocation6], 1
    %s1852 = scalar_lea.sflag [#allocation6], 1
    %1853 = vsyncpa %s1852, 1
    %1854 = vsyncpa [#allocation9], 1
    %1855 = vsyncpa [#allocation12], 1
    %1856 = vsyncpa [#allocation4], 1
    %s1857 = scalar_lea.sflag [#allocation4], 1
    %1858 = vsyncpa %s1857, 1

</llo_original>
